<compile_context>
chip_gen: v7x
topology: tpu7x:2x2x1
jax: 0.10.0
libtpu: 0.0.40
codegen_flags: <defaults>
</compile_context>

<pallas_src>
import functools

import jax
import jax.numpy as jnp
from jax.experimental import pallas as pl
from jax.experimental.pallas import tpu as pltpu


# --------------------------- small helpers ----------------------------------

def _round128(v):
    return ((int(v) + 127) // 128) * 128


def _full_spec(shape):
    """Whole-array block, constant index map (resident across the grid)."""
    nd = len(shape)
    return pl.BlockSpec(shape, lambda i, _nd=nd: (0,) * _nd)


def _vmem_limit(estimate_bytes):
    """Generation-aware scoped-VMEM request (no hard 32 MiB ceiling)."""
    cap = 128 * 1024 * 1024
    try:
        info = pltpu.get_tpu_info()
        cap = int(getattr(info, "vmem_capacity_bytes", cap))
    except Exception:
        pass  # fall back to a conservative 128 MiB assumption
    return int(min(max(int(estimate_bytes), 16 << 20), int(cap * 0.9)))


# --------------------------- fused kernel ------------------------------------

def _fused_actor_kernel(*refs, n_gnn, n_mlp, phases, ring, with_act):
    # refs = [a?] h0 (gnnW, gnnB)*n_gnn (mlpW, mlpB)*n_mlp
    #        [log_std, inv_std, act]?  ->  mu [, logp]  ->  h_scratch
    idx = 0
    a_ref = None
    if not ring:
        a_ref = refs[idx]; idx += 1
    h0_ref = refs[idx]; idx += 1
    gnn_refs = refs[idx:idx + 2 * n_gnn]; idx += 2 * n_gnn
    mlp_refs = refs[idx:idx + 2 * n_mlp]; idx += 2 * n_mlp
    if with_act:
        log_std_ref, inv_std_ref, act_ref = refs[idx:idx + 3]; idx += 3
    mu_ref = refs[idx]; idx += 1
    if with_act:
        logp_ref = refs[idx]; idx += 1
    h_sc = refs[idx]

    h = h0_ref[...]                                  # (N, f0_pad) f32
    n = h.shape[0]
    a = a_ref[...] if a_ref is not None else None    # (N, N) bf16 fallback

    # ---- GNN stack: one block-diagonal bf16 dot per layer --------------------
    for l in range(n_gnn):
        wblk = gnn_refs[2 * l][...]                  # (2*fin_p, fout_p) bf16
        bias = gnn_refs[2 * l + 1][...]              # (1, fout_p) f32
        if ring:
            # ring + self loops, mean aggregation (degree 3) -> XLU rolls.
            agg = (h + pltpu.roll(h, shift=1, axis=0)
                   + pltpu.roll(h, shift=n - 1, axis=0)) * (1.0 / 3.0)
        else:
            agg = jnp.dot(a, h.astype(jnp.bfloat16),
                          preferred_element_type=jnp.float32)
        xcat = jnp.concatenate([h, agg], axis=1).astype(jnp.bfloat16)
        # relu of disjoint blocks == concat(relu(self), relu(neigh))
        h = jnp.maximum(
            jnp.dot(xcat, wblk, preferred_element_type=jnp.float32) + bias, 0.0)

    # ---- phase fold in VMEM: (N, Fp) -> (M, phases*Fp) -----------------------
    # Row m*phases+p of h becomes lane block p of row m (row-major reshape),
    # realized with strided sublane reads from the scratch.
    h_sc[...] = h
    m = n // phases
    xs = [h_sc[pl.ds(p, m, stride=phases), :] for p in range(phases)]
    x = jnp.concatenate(xs, axis=1).astype(jnp.bfloat16)   # (M, phases*Fp)

    # ---- MLP + Gaussian log-prob --------------------------------------------
    y = x
    for l in range(n_mlp):
        w = mlp_refs[2 * l][...]                     # bf16
        bias = mlp_refs[2 * l + 1][...]              # f32
        y = jnp.dot(x, w, preferred_element_type=jnp.float32) + bias
        if l < n_mlp - 1:
            x = jnp.tanh(y).astype(jnp.bfloat16)
    mu = y                                           # (M, act_pad) lane-dense
    mu_ref[...] = mu.astype(mu_ref.dtype)

    if with_act:
        z = (act_ref[...] - mu) * inv_std_ref[...]   # inv_std precomputed host-side
        logp_ref[...] = (-0.5 * z * z - log_std_ref[...]
                         - 0.5 * jnp.log(2.0 * jnp.pi)).astype(logp_ref.dtype)


def _fused_actor_call(h0_pad, gnn_packed, mlp_packed, log_std_pad, inv_std_pad,
                      act_pad=None, a_bf16=None, phases=1):
    n = h0_pad.shape[0]
    m = n // phases
    gnn_out_p = gnn_packed[-1][0].shape[1]
    ap = mlp_packed[-1][0].shape[1]
    with_act = act_pad is not None
    ring = a_bf16 is None
    n_gnn, n_mlp = len(gnn_packed), len(mlp_packed)

    inputs = []
    if not ring:
        inputs.append(a_bf16)
    inputs.append(h0_pad)
    for w, b in gnn_packed:
        inputs += [w, b]
    for w, b in mlp_packed:
        inputs += [w, b]
    if with_act:
        inputs += [log_std_pad, inv_std_pad, act_pad]

    in_specs = [_full_spec(xx.shape) for xx in inputs]
    if with_act:
        out_shape = (jax.ShapeDtypeStruct((m, ap), jnp.float32),
                     jax.ShapeDtypeStruct((m, ap), jnp.float32))
        out_specs = [_full_spec((m, ap)), _full_spec((m, ap))]
    else:
        out_shape = jax.ShapeDtypeStruct((m, ap), jnp.float32)
        out_specs = _full_spec((m, ap))

    # Actual residency: inputs (x2 for potential double buffers) + outputs (x2)
    # + f32 scratch + slack for Mosaic-internal scratch.
    n_out = 2 if with_act else 1
    est = (2 * sum(int(xx.size) * xx.dtype.itemsize for xx in inputs)
           + n * gnn_out_p * 4 + 2 * n_out * m * ap * 4 + (8 << 20))

    kern = functools.partial(_fused_actor_kernel, n_gnn=n_gnn, n_mlp=n_mlp,
                             phases=phases, ring=ring, with_act=with_act)
    return pl.pallas_call(
        kern,
        out_shape=out_shape,
        grid_spec=pltpu.PrefetchScalarGridSpec(
            num_scalar_prefetch=0,
            grid=(1,),
            in_specs=in_specs,
            out_specs=out_specs,
            scratch_shapes=[pltpu.VMEM((n, gnn_out_p), jnp.float32)]),
        compiler_params=pltpu.CompilerParams(
            dimension_semantics=("arbitrary",),
            vmem_limit_bytes=_vmem_limit(est)),
    )(*inputs)


# --------------------------- Parameter setup --------------------------------

def init_params(key, obs_dim, act_dim, gnn_n_layers, gnn_size,
                mlp_n_layers, mlp_size):
    phases, features = obs_dim
    params = {"gnn": [], "mlp": []}

    def scaled(k, fan_in, fan_out):
        return (jax.random.normal(k, (fan_in, fan_out), jnp.float32)
                / jnp.sqrt(jnp.float32(fan_in)))

    k = key
    in_size = features
    for _ in range(gnn_n_layers):
        k, k1, k2 = jax.random.split(k, 3)
        params["gnn"].append(dict(
            w_self=scaled(k1, in_size, gnn_size),
            b_self=jnp.zeros((gnn_size,), jnp.float32),
            w_msg=scaled(k2, in_size, gnn_size),
            b_msg=jnp.zeros((gnn_size,), jnp.float32)))
        in_size = 2 * gnn_size

    mlp_in = in_size * phases
    sizes = [mlp_in] + [mlp_size] * mlp_n_layers + [act_dim]
    for i in range(len(sizes) - 1):
        k, k1 = jax.random.split(k)
        params["mlp"].append(dict(
            w=scaled(k1, sizes[i], sizes[i + 1]),
            b=jnp.zeros((sizes[i + 1],), jnp.float32)))

    params["log_std"] = -0.5 * jnp.ones((act_dim,), jnp.float32)
    return params


def pack_params(params, obs_dim, act_dim):
    """Host-side packing: block-diagonal bf16 GNN weights, lane-padded (x128)
    widths everywhere, phase-scattered first MLP layer, precomputed inv_std."""
    phases, features = obs_dim

    gnn_packed = []
    fin, fin_p = features, _round128(features)
    feat_pad = fin_p
    for layer in params["gnn"]:
        gsz = layer["w_self"].shape[1]
        fout, fout_p = 2 * gsz, _round128(2 * gsz)
        wblk = jnp.zeros((2 * fin_p, fout_p), jnp.float32)
        wblk = wblk.at[:fin, :gsz].set(layer["w_self"])                  # self
        wblk = wblk.at[fin_p:fin_p + fin, gsz:fout].set(layer["w_msg"])  # neigh
        bias = jnp.zeros((1, fout_p), jnp.float32)
        bias = bias.at[0, :gsz].set(layer["b_self"])
        bias = bias.at[0, gsz:fout].set(layer["b_msg"])
        gnn_packed.append((wblk.astype(jnp.bfloat16), bias))
        fin, fin_p = fout, fout_p
    gnn_out, gnn_out_p = fin, fin_p

    ap = _round128(act_dim)
    mlp_packed = []
    n_mlp = len(params["mlp"])
    for i, layer in enumerate(params["mlp"]):
        w, b = layer["w"], layer["b"]
        out_real = w.shape[1]
        out_p = ap if i == n_mlp - 1 else _round128(out_real)
        if i == 0:
            # First layer consumes the phase-folded GNN output: real rows live
            # at p*gnn_out_p + [0:gnn_out) of the padded input width.
            in_p = phases * gnn_out_p
            wp = jnp.zeros((in_p, out_p), jnp.float32)
            for p in range(phases):
                wp = wp.at[p * gnn_out_p:p * gnn_out_p + gnn_out, :out_real].set(
                    w[p * gnn_out:(p + 1) * gnn_out, :])
        else:
            in_real = params["mlp"][i - 1]["w"].shape[1]
            in_p = _round128(in_real)
            wp = jnp.zeros((in_p, out_p), jnp.float32).at[:in_real, :out_real].set(w)
        bp = jnp.zeros((1, out_p), jnp.float32).at[0, :out_real].set(b)
        mlp_packed.append((wp.astype(jnp.bfloat16), bp))

    log_std_pad = jnp.zeros((1, ap), jnp.float32).at[0, :act_dim].set(params["log_std"])
    inv_std_pad = jnp.exp(-log_std_pad)
    return dict(gnn=gnn_packed, mlp=mlp_packed, log_std_pad=log_std_pad,
                inv_std_pad=inv_std_pad, act_dim=act_dim, act_pad=ap,
                feat_pad=feat_pad, phases=phases)


# --------------------------- Forward pass ------------------------------------

def gnn_gaussian_actor_forward(packed, obs, act=None, a_norm=None):
    """a_norm=None -> ring+self fast path (pltpu.roll); else dense fallback."""
    steps, num_cpu, tasks, phases, features = obs.shape
    lead = (steps, num_cpu, tasks)
    act_dim, ap = packed["act_dim"], packed["act_pad"]
    f0p = packed["feat_pad"]

    h0 = obs.reshape(-1, features).astype(jnp.float32)
    h0 = jnp.pad(h0, ((0, 0), (0, f0p - features)))            # lane-dense input

    act_p2d = None
    if act is not None:
        act_p2d = jnp.pad(act.reshape(-1, act_dim).astype(jnp.float32),
                          ((0, 0), (0, ap - act_dim)))
    a_bf16 = None if a_norm is None else a_norm.astype(jnp.bfloat16)

    outs = _fused_actor_call(h0, packed["gnn"], packed["mlp"],
                             packed["log_std_pad"], packed["inv_std_pad"],
                             act_p2d, a_bf16, phases)
    if act is not None:
        mu_pad, logp_pad = outs
    else:
        mu_pad, logp_pad = outs, None

    mu = mu_pad[:, :act_dim].reshape(lead + (act_dim,))
    std = jnp.exp(packed["log_std_pad"][0, :act_dim])
    logp = None if logp_pad is None else logp_pad[:, :act_dim].reshape(act.shape)
    # TODO(synk): torch returns a Normal distribution object; here pi ~ (mu, std)
    # and log_prob is elementwise (sum over the last axis for the joint logp).
    return (mu, std), logp


# --------------------------- Reference (plain JAX) ---------------------------

def reference_forward(params, a_norm, obs, act, *, phases, features, num_cpu):
    steps = obs.shape[0]
    h = obs.reshape(-1, features)
    for layer in params["gnn"]:
        h_self = jax.nn.relu(h @ layer["w_self"] + layer["b_self"])
        h_neigh = jax.nn.relu((a_norm @ h) @ layer["w_msg"] + layer["b_msg"])
        h = jnp.concatenate([h_self, h_neigh], axis=-1)
    feat = h.shape[-1] * phases
    x = h.reshape(steps, num_cpu, -1, feat)
    n_hidden = len(params["mlp"]) - 1
    for i, layer in enumerate(params["mlp"]):
        x = x @ layer["w"] + layer["b"]
        if i < n_hidden:
            x = jnp.tanh(x)
    mu = x
    log_std = params["log_std"]
    std = jnp.exp(log_std)
    z = (act - mu) / std
    logp = -0.5 * z * z - log_std - 0.5 * jnp.log(2.0 * jnp.pi)
    return mu, std, logp


# --------------------------- Main ---------------------------------------------

if __name__ == "__main__":
    steps, num_cpu, tasks, phases, features = 2, 2, 2, 4, 8
    act_dim = 3
    gnn_n_layers, gnn_size = 2, 16
    mlp_n_layers, mlp_size = 2, 32

    key = jax.random.PRNGKey(0)
    k_param, k_obs, k_act = jax.random.split(key, 3)

    params = init_params(k_param, (phases, features), act_dim,
                         gnn_n_layers, gnn_size, mlp_n_layers, mlp_size)
    packed = pack_params(params, (phases, features), act_dim)

    obs = jax.random.normal(
        k_obs, (steps, num_cpu, tasks, phases, features), jnp.float32)
    act = jax.random.normal(
        k_act, (steps, num_cpu, tasks, act_dim), jnp.float32)

    # Deterministic graph (g_forw): ring + self loops over all flattened nodes,
    # row-normalized adjacency (mean-neighbor aggregation, degree 3 per row).
    n_nodes = steps * num_cpu * tasks * phases
    idx = jnp.arange(n_nodes)
    eye = jnp.eye(n_nodes, dtype=jnp.float32)
    adj = eye + eye[(idx + 1) % n_nodes] + eye[(idx - 1) % n_nodes]
    a_norm = adj / adj.sum(axis=1, keepdims=True)

    # 1) Fused fast path: ring graph via pltpu.roll, with act (logp computed).
    (mu, std), logp = gnn_gaussian_actor_forward(packed, obs, act)
    jax.block_until_ready((mu, std, logp))

    # 2) Sampling path: act=None -> no act/log_std inputs, no logp compute/store.
    (mu_s, std_s), logp_s = gnn_gaussian_actor_forward(packed, obs, None)
    jax.block_until_ready(mu_s)

    # 3) General-graph fallback: dense row-normalized adjacency in VMEM.
    (mu_d, _), logp_d = gnn_gaussian_actor_forward(packed, obs, act, a_norm=a_norm)
    jax.block_until_ready((mu_d, logp_d))

    mu_ref, std_ref, logp_ref = reference_forward(
        params, a_norm, obs, act,
        phases=phases, features=features, num_cpu=num_cpu)

    assert mu.shape == (steps, num_cpu, tasks, act_dim), mu.shape
    assert logp.shape == act.shape, logp.shape
    assert logp_s is None

    tol = dict(atol=2e-2, rtol=2e-2)   # bf16 MXU operands vs f32 reference
    assert jnp.allclose(mu, mu_ref, **tol)
    assert jnp.allclose(std, std_ref, atol=1e-5, rtol=1e-5)
    assert jnp.allclose(logp, logp_ref, **tol)
    assert jnp.allclose(mu_s, mu_ref, **tol)
    assert jnp.allclose(mu_d, mu_ref, **tol)
    assert jnp.allclose(logp_d, logp_ref, **tol)

    print("KERNEL_OK")
</pallas_src>

<mosaic_0001>
module attributes {stable_mosaic.version = 11 : i64} {
  func.func @_fused_actor_kernel(%arg0: i32, %arg1: memref<32x128xf32, #tpu.memory_space<vmem>>, %arg2: memref<256x128xbf16, #tpu.memory_space<vmem>>, %arg3: memref<1x128xf32, #tpu.memory_space<vmem>>, %arg4: memref<256x128xbf16, #tpu.memory_space<vmem>>, %arg5: memref<1x128xf32, #tpu.memory_space<vmem>>, %arg6: memref<512x128xbf16, #tpu.memory_space<vmem>>, %arg7: memref<1x128xf32, #tpu.memory_space<vmem>>, %arg8: memref<128x128xbf16, #tpu.memory_space<vmem>>, %arg9: memref<1x128xf32, #tpu.memory_space<vmem>>, %arg10: memref<128x128xbf16, #tpu.memory_space<vmem>>, %arg11: memref<1x128xf32, #tpu.memory_space<vmem>>, %arg12: memref<1x128xf32, #tpu.memory_space<vmem>>, %arg13: memref<1x128xf32, #tpu.memory_space<vmem>>, %arg14: memref<8x128xf32, #tpu.memory_space<vmem>>, %arg15: memref<8x128xf32, #tpu.memory_space<vmem>>, %arg16: memref<8x128xf32, #tpu.memory_space<vmem>>, %arg17: memref<32x128xf32, #tpu.memory_space<vmem>>) attributes {dimension_semantics = [#tpu.dimension_semantics<arbitrary>], iteration_bounds = array<i64: 1>, scalar_prefetch = 0 : i64, scratch_operands = 1 : i64, tpu.core_type = #tpu.core_type<tc>, window_params = [{pipeline_mode = #tpu.pipeline_mode<synchronous>, transform_indices = @transform_0, window_bounds = array<i64: 32, 128>}, {pipeline_mode = #tpu.pipeline_mode<synchronous>, transform_indices = @transform_1, window_bounds = array<i64: 256, 128>}, {pipeline_mode = #tpu.pipeline_mode<synchronous>, transform_indices = @transform_2, window_bounds = array<i64: 1, 128>}, {pipeline_mode = #tpu.pipeline_mode<synchronous>, transform_indices = @transform_3, window_bounds = array<i64: 256, 128>}, {pipeline_mode = #tpu.pipeline_mode<synchronous>, transform_indices = @transform_4, window_bounds = array<i64: 1, 128>}, {pipeline_mode = #tpu.pipeline_mode<synchronous>, transform_indices = @transform_5, window_bounds = array<i64: 512, 128>}, {pipeline_mode = #tpu.pipeline_mode<synchronous>, transform_indices = @transform_6, window_bounds = array<i64: 1, 128>}, {pipeline_mode = #tpu.pipeline_mode<synchronous>, transform_indices = @transform_7, window_bounds = array<i64: 128, 128>}, {pipeline_mode = #tpu.pipeline_mode<synchronous>, transform_indices = @transform_8, window_bounds = array<i64: 1, 128>}, {pipeline_mode = #tpu.pipeline_mode<synchronous>, transform_indices = @transform_9, window_bounds = array<i64: 128, 128>}, {pipeline_mode = #tpu.pipeline_mode<synchronous>, transform_indices = @transform_10, window_bounds = array<i64: 1, 128>}, {pipeline_mode = #tpu.pipeline_mode<synchronous>, transform_indices = @transform_11, window_bounds = array<i64: 1, 128>}, {pipeline_mode = #tpu.pipeline_mode<synchronous>, transform_indices = @transform_12, window_bounds = array<i64: 1, 128>}, {pipeline_mode = #tpu.pipeline_mode<synchronous>, transform_indices = @transform_13, window_bounds = array<i64: 8, 128>}, {pipeline_mode = #tpu.pipeline_mode<synchronous>, transform_indices = @transform_14, window_bounds = array<i64: 8, 128>}, {pipeline_mode = #tpu.pipeline_mode<synchronous>, transform_indices = @transform_15, window_bounds = array<i64: 8, 128>}]} {
    %c0 = arith.constant 0 : index
    %c0_0 = arith.constant 0 : index
    %0 = vector.load %arg1[%c0, %c0_0] : memref<32x128xf32, #tpu.memory_space<vmem>>, vector<32x128xf32>
    %c0_1 = arith.constant 0 : index
    %c0_2 = arith.constant 0 : index
    %1 = vector.load %arg2[%c0_1, %c0_2] : memref<256x128xbf16, #tpu.memory_space<vmem>>, vector<256x128xbf16>
    %c0_3 = arith.constant 0 : index
    %c0_4 = arith.constant 0 : index
    %2 = vector.load %arg3[%c0_3, %c0_4] : memref<1x128xf32, #tpu.memory_space<vmem>>, vector<1x128xf32>
    %c1_i32 = arith.constant 1 : i32
    %3 = tpu.dynamic_rotate %0 by %c1_i32 dim 0 : vector<32x128xf32>, i32 -> vector<32x128xf32>
    %4 = arith.addf %0, %3 : vector<32x128xf32>
    %c31_i32 = arith.constant 31 : i32
    %5 = tpu.dynamic_rotate %0 by %c31_i32 dim 0 : vector<32x128xf32>, i32 -> vector<32x128xf32>
    %6 = arith.addf %4, %5 : vector<32x128xf32>
    %cst = arith.constant 0.333333343 : f32
    %7 = vector.broadcast %cst : f32 to vector<32x128xf32>
    %8 = arith.mulf %6, %7 : vector<32x128xf32>
    %9 = tpu.concatenate %0, %8 in 1 : vector<32x128xf32>, vector<32x128xf32> -> vector<32x256xf32>
    %10 = arith.truncf %9 : vector<32x256xf32> to vector<32x256xbf16>
    %cst_5 = arith.constant dense<0.000000e+00> : vector<32x128xf32>
    %11 = tpu.matmul %10, %1, %cst_5 {dimension_numbers = #tpu.dot_dimension_numbers<[1], [0], [0], [1], [0, 0, 1, 1], [], []>} : vector<32x256xbf16>, vector<256x128xbf16>, vector<32x128xf32> -> vector<32x128xf32>
    %12 = vector.broadcast %2 : vector<1x128xf32> to vector<32x128xf32>
    %13 = arith.addf %11, %12 : vector<32x128xf32>
    %cst_6 = arith.constant 0.000000e+00 : f32
    %14 = vector.broadcast %cst_6 : f32 to vector<32x128xf32>
    %15 = arith.maximumf %13, %14 : vector<32x128xf32>
    %c0_7 = arith.constant 0 : index
    %c0_8 = arith.constant 0 : index
    %16 = vector.load %arg4[%c0_7, %c0_8] : memref<256x128xbf16, #tpu.memory_space<vmem>>, vector<256x128xbf16>
    %c0_9 = arith.constant 0 : index
    %c0_10 = arith.constant 0 : index
    %17 = vector.load %arg5[%c0_9, %c0_10] : memref<1x128xf32, #tpu.memory_space<vmem>>, vector<1x128xf32>
    %c1_i32_11 = arith.constant 1 : i32
    %18 = tpu.dynamic_rotate %15 by %c1_i32_11 dim 0 : vector<32x128xf32>, i32 -> vector<32x128xf32>
    %19 = arith.addf %15, %18 : vector<32x128xf32>
    %c31_i32_12 = arith.constant 31 : i32
    %20 = tpu.dynamic_rotate %15 by %c31_i32_12 dim 0 : vector<32x128xf32>, i32 -> vector<32x128xf32>
    %21 = arith.addf %19, %20 : vector<32x128xf32>
    %cst_13 = arith.constant 0.333333343 : f32
    %22 = vector.broadcast %cst_13 : f32 to vector<32x128xf32>
    %23 = arith.mulf %21, %22 : vector<32x128xf32>
    %24 = tpu.concatenate %15, %23 in 1 : vector<32x128xf32>, vector<32x128xf32> -> vector<32x256xf32>
    %25 = arith.truncf %24 : vector<32x256xf32> to vector<32x256xbf16>
    %cst_14 = arith.constant dense<0.000000e+00> : vector<32x128xf32>
    %26 = tpu.matmul %25, %16, %cst_14 {dimension_numbers = #tpu.dot_dimension_numbers<[1], [0], [0], [1], [0, 0, 1, 1], [], []>} : vector<32x256xbf16>, vector<256x128xbf16>, vector<32x128xf32> -> vector<32x128xf32>
    %27 = vector.broadcast %17 : vector<1x128xf32> to vector<32x128xf32>
    %28 = arith.addf %26, %27 : vector<32x128xf32>
    %cst_15 = arith.constant 0.000000e+00 : f32
    %29 = vector.broadcast %cst_15 : f32 to vector<32x128xf32>
    %30 = arith.maximumf %28, %29 : vector<32x128xf32>
    %c0_16 = arith.constant 0 : index
    %c0_17 = arith.constant 0 : index
    %31 = vector.load %arg17[%c0_16, %c0_17] : memref<32x128xf32, #tpu.memory_space<vmem>>, vector<32x128xf32>
    tpu.vector_store %arg17[%c0_16, %c0_17], %30 {strides = array<i32>} : memref<32x128xf32, #tpu.memory_space<vmem>>, vector<32x128xf32>,
    %c0_18 = arith.constant 0 : index
    %c0_19 = arith.constant 0 : index
    %32 = tpu.strided_load %arg17[%c0_18, %c0_19] {strides = array<i32: 4, 1>} : memref<32x128xf32, #tpu.memory_space<vmem>>, vector<8x128xf32>
    %c1 = arith.constant 1 : index
    %c0_20 = arith.constant 0 : index
    %33 = tpu.strided_load %arg17[%c1, %c0_20] {strides = array<i32: 4, 1>} : memref<32x128xf32, #tpu.memory_space<vmem>>, vector<8x128xf32>
    %c2 = arith.constant 2 : index
    %c0_21 = arith.constant 0 : index
    %34 = tpu.strided_load %arg17[%c2, %c0_21] {strides = array<i32: 4, 1>} : memref<32x128xf32, #tpu.memory_space<vmem>>, vector<8x128xf32>
    %c3 = arith.constant 3 : index
    %c0_22 = arith.constant 0 : index
    %35 = tpu.strided_load %arg17[%c3, %c0_22] {strides = array<i32: 4, 1>} : memref<32x128xf32, #tpu.memory_space<vmem>>, vector<8x128xf32>
    %36 = tpu.concatenate %32, %33, %34, %35 in 1 : vector<8x128xf32>, vector<8x128xf32>, vector<8x128xf32>, vector<8x128xf32> -> vector<8x512xf32>
    %37 = arith.truncf %36 : vector<8x512xf32> to vector<8x512xbf16>
    %c0_23 = arith.constant 0 : index
    %c0_24 = arith.constant 0 : index
    %38 = vector.load %arg6[%c0_23, %c0_24] : memref<512x128xbf16, #tpu.memory_space<vmem>>, vector<512x128xbf16>
    %c0_25 = arith.constant 0 : index
    %c0_26 = arith.constant 0 : index
    %39 = vector.load %arg7[%c0_25, %c0_26] : memref<1x128xf32, #tpu.memory_space<vmem>>, vector<1x128xf32>
    %cst_27 = arith.constant dense<0.000000e+00> : vector<8x128xf32>
    %40 = tpu.matmul %37, %38, %cst_27 {dimension_numbers = #tpu.dot_dimension_numbers<[1], [0], [0], [1], [0, 0, 1, 1], [], []>} : vector<8x512xbf16>, vector<512x128xbf16>, vector<8x128xf32> -> vector<8x128xf32>
    %41 = vector.broadcast %39 : vector<1x128xf32> to vector<8x128xf32>
    %42 = arith.addf %40, %41 : vector<8x128xf32>
    %43 = math.tanh %42 : vector<8x128xf32>
    %44 = arith.truncf %43 : vector<8x128xf32> to vector<8x128xbf16>
    %c0_28 = arith.constant 0 : index
    %c0_29 = arith.constant 0 : index
    %45 = vector.load %arg8[%c0_28, %c0_29] : memref<128x128xbf16, #tpu.memory_space<vmem>>, vector<128x128xbf16>
    %c0_30 = arith.constant 0 : index
    %c0_31 = arith.constant 0 : index
    %46 = vector.load %arg9[%c0_30, %c0_31] : memref<1x128xf32, #tpu.memory_space<vmem>>, vector<1x128xf32>
    %cst_32 = arith.constant dense<0.000000e+00> : vector<8x128xf32>
    %47 = tpu.matmul %44, %45, %cst_32 {dimension_numbers = #tpu.dot_dimension_numbers<[1], [0], [0], [1], [0, 0, 1, 1], [], []>} : vector<8x128xbf16>, vector<128x128xbf16>, vector<8x128xf32> -> vector<8x128xf32>
    %48 = vector.broadcast %46 : vector<1x128xf32> to vector<8x128xf32>
    %49 = arith.addf %47, %48 : vector<8x128xf32>
    %50 = math.tanh %49 : vector<8x128xf32>
    %51 = arith.truncf %50 : vector<8x128xf32> to vector<8x128xbf16>
    %c0_33 = arith.constant 0 : index
    %c0_34 = arith.constant 0 : index
    %52 = vector.load %arg10[%c0_33, %c0_34] : memref<128x128xbf16, #tpu.memory_space<vmem>>, vector<128x128xbf16>
    %c0_35 = arith.constant 0 : index
    %c0_36 = arith.constant 0 : index
    %53 = vector.load %arg11[%c0_35, %c0_36] : memref<1x128xf32, #tpu.memory_space<vmem>>, vector<1x128xf32>
    %cst_37 = arith.constant dense<0.000000e+00> : vector<8x128xf32>
    %54 = tpu.matmul %51, %52, %cst_37 {dimension_numbers = #tpu.dot_dimension_numbers<[1], [0], [0], [1], [0, 0, 1, 1], [], []>} : vector<8x128xbf16>, vector<128x128xbf16>, vector<8x128xf32> -> vector<8x128xf32>
    %55 = vector.broadcast %53 : vector<1x128xf32> to vector<8x128xf32>
    %56 = arith.addf %54, %55 : vector<8x128xf32>
    %c0_38 = arith.constant 0 : index
    %c0_39 = arith.constant 0 : index
    %57 = vector.load %arg15[%c0_38, %c0_39] : memref<8x128xf32, #tpu.memory_space<vmem>>, vector<8x128xf32>
    tpu.vector_store %arg15[%c0_38, %c0_39], %56 {strides = array<i32>} : memref<8x128xf32, #tpu.memory_space<vmem>>, vector<8x128xf32>,
    %c0_40 = arith.constant 0 : index
    %c0_41 = arith.constant 0 : index
    %58 = vector.load %arg14[%c0_40, %c0_41] : memref<8x128xf32, #tpu.memory_space<vmem>>, vector<8x128xf32>
    %59 = arith.subf %58, %56 : vector<8x128xf32>
    %c0_42 = arith.constant 0 : index
    %c0_43 = arith.constant 0 : index
    %60 = vector.load %arg13[%c0_42, %c0_43] : memref<1x128xf32, #tpu.memory_space<vmem>>, vector<1x128xf32>
    %61 = vector.broadcast %60 : vector<1x128xf32> to vector<8x128xf32>
    %62 = arith.mulf %59, %61 : vector<8x128xf32>
    %cst_44 = arith.constant -5.000000e-01 : f32
    %63 = vector.broadcast %cst_44 : f32 to vector<8x128xf32>
    %64 = arith.mulf %63, %62 : vector<8x128xf32>
    %65 = arith.mulf %64, %62 : vector<8x128xf32>
    %c0_45 = arith.constant 0 : index
    %c0_46 = arith.constant 0 : index
    %66 = vector.load %arg12[%c0_45, %c0_46] : memref<1x128xf32, #tpu.memory_space<vmem>>, vector<1x128xf32>
    %67 = vector.broadcast %66 : vector<1x128xf32> to vector<8x128xf32>
    %68 = arith.subf %65, %67 : vector<8x128xf32>
    %cst_47 = arith.constant 6.28318548 : f32
    %69 = math.log %cst_47 : f32
    %cst_48 = arith.constant 5.000000e-01 : f32
    %70 = arith.mulf %cst_48, %69 : f32
    %71 = vector.broadcast %70 : f32 to vector<8x128xf32>
    %72 = arith.subf %68, %71 : vector<8x128xf32>
    %c0_49 = arith.constant 0 : index
    %c0_50 = arith.constant 0 : index
    %73 = vector.load %arg16[%c0_49, %c0_50] : memref<8x128xf32, #tpu.memory_space<vmem>>, vector<8x128xf32>
    tpu.vector_store %arg16[%c0_49, %c0_50], %72 {strides = array<i32>} : memref<8x128xf32, #tpu.memory_space<vmem>>, vector<8x128xf32>,
    return
  }
  func.func @transform_0(%arg0: i32) -> (i32, i32) {
    %c0_i32 = arith.constant 0 : i32
    %c0_i32_0 = arith.constant 0 : i32
    %c0_i32_1 = arith.constant 0 : i32
    return %c0_i32, %c0_i32_0 : i32, i32
  }
  func.func @transform_1(%arg0: i32) -> (i32, i32) {
    %c0_i32 = arith.constant 0 : i32
    %c0_i32_0 = arith.constant 0 : i32
    %c0_i32_1 = arith.constant 0 : i32
    return %c0_i32, %c0_i32_0 : i32, i32
  }
  func.func @transform_2(%arg0: i32) -> (i32, i32) {
    %c0_i32 = arith.constant 0 : i32
    %c0_i32_0 = arith.constant 0 : i32
    %c0_i32_1 = arith.constant 0 : i32
    return %c0_i32, %c0_i32_0 : i32, i32
  }
  func.func @transform_3(%arg0: i32) -> (i32, i32) {
    %c0_i32 = arith.constant 0 : i32
    %c0_i32_0 = arith.constant 0 : i32
    %c0_i32_1 = arith.constant 0 : i32
    return %c0_i32, %c0_i32_0 : i32, i32
  }
  func.func @transform_4(%arg0: i32) -> (i32, i32) {
    %c0_i32 = arith.constant 0 : i32
    %c0_i32_0 = arith.constant 0 : i32
    %c0_i32_1 = arith.constant 0 : i32
    return %c0_i32, %c0_i32_0 : i32, i32
  }
  func.func @transform_5(%arg0: i32) -> (i32, i32) {
    %c0_i32 = arith.constant 0 : i32
    %c0_i32_0 = arith.constant 0 : i32
    %c0_i32_1 = arith.constant 0 : i32
    return %c0_i32, %c0_i32_0 : i32, i32
  }
  func.func @transform_6(%arg0: i32) -> (i32, i32) {
    %c0_i32 = arith.constant 0 : i32
    %c0_i32_0 = arith.constant 0 : i32
    %c0_i32_1 = arith.constant 0 : i32
    return %c0_i32, %c0_i32_0 : i32, i32
  }
  func.func @transform_7(%arg0: i32) -> (i32, i32) {
    %c0_i32 = arith.constant 0 : i32
    %c0_i32_0 = arith.constant 0 : i32
    %c0_i32_1 = arith.constant 0 : i32
    return %c0_i32, %c0_i32_0 : i32, i32
  }
  func.func @transform_8(%arg0: i32) -> (i32, i32) {
    %c0_i32 = arith.constant 0 : i32
    %c0_i32_0 = arith.constant 0 : i32
    %c0_i32_1 = arith.constant 0 : i32
    return %c0_i32, %c0_i32_0 : i32, i32
  }
  func.func @transform_9(%arg0: i32) -> (i32, i32) {
    %c0_i32 = arith.constant 0 : i32
    %c0_i32_0 = arith.constant 0 : i32
    %c0_i32_1 = arith.constant 0 : i32
    return %c0_i32, %c0_i32_0 : i32, i32
  }
  func.func @transform_10(%arg0: i32) -> (i32, i32) {
    %c0_i32 = arith.constant 0 : i32
    %c0_i32_0 = arith.constant 0 : i32
    %c0_i32_1 = arith.constant 0 : i32
    return %c0_i32, %c0_i32_0 : i32, i32
  }
  func.func @transform_11(%arg0: i32) -> (i32, i32) {
    %c0_i32 = arith.constant 0 : i32
    %c0_i32_0 = arith.constant 0 : i32
    %c0_i32_1 = arith.constant 0 : i32
    return %c0_i32, %c0_i32_0 : i32, i32
  }
  func.func @transform_12(%arg0: i32) -> (i32, i32) {
    %c0_i32 = arith.constant 0 : i32
    %c0_i32_0 = arith.constant 0 : i32
    %c0_i32_1 = arith.constant 0 : i32
    return %c0_i32, %c0_i32_0 : i32, i32
  }
  func.func @transform_13(%arg0: i32) -> (i32, i32) {
    %c0_i32 = arith.constant 0 : i32
    %c0_i32_0 = arith.constant 0 : i32
    %c0_i32_1 = arith.constant 0 : i32
    return %c0_i32, %c0_i32_0 : i32, i32
  }
  func.func @transform_14(%arg0: i32) -> (i32, i32) {
    %c0_i32 = arith.constant 0 : i32
    %c0_i32_0 = arith.constant 0 : i32
    %c0_i32_1 = arith.constant 0 : i32
    return %c0_i32, %c0_i32_0 : i32, i32
  }
  func.func @transform_15(%arg0: i32) -> (i32, i32) {
    %c0_i32 = arith.constant 0 : i32
    %c0_i32_0 = arith.constant 0 : i32
    %c0_i32_1 = arith.constant 0 : i32
    return %c0_i32, %c0_i32_0 : i32, i32
  }
}

</mosaic_0001>

<llo_original>
// kernel: tpu_custom_call.1
$region0: #{tpu_custom_call.1}
  #allocation0 [shape = 'u32[]', space=smem, size = 0x4, offset = 0x4, fixed_abs, tag = 'smem constant byte address 0x4 - core index']
  #allocation1 [shape = 'u32[144,128]{1,0:T(1,128)}', space=vmem, size = 0x12000, scoped, tag = 'internal scratch']
  #allocation2 [shape = 'f32[32,128]{1,0:T(8,128)}', space=vmem, size = 0x4000, scoped, tag = 'scratch operand']
  %s0 = inlined_call_operand.hbm [shape: f32[32,128], index: 0, kind: input, shape index: {}]
  %s1 = inlined_call_operand.hbm [shape: bf16[256,128], index: 1, kind: input, shape index: {}]
  %s2 = inlined_call_operand.vmem [shape: f32[1,128], index: 2, kind: input, shape index: {}]
  %s3 = inlined_call_operand.hbm [shape: bf16[256,128], index: 3, kind: input, shape index: {}]
  %s4 = inlined_call_operand.vmem [shape: f32[1,128], index: 4, kind: input, shape index: {}]
  %s5 = inlined_call_operand.hbm [shape: bf16[512,128], index: 5, kind: input, shape index: {}]
  %s6 = inlined_call_operand.vmem [shape: f32[1,128], index: 6, kind: input, shape index: {}]
  %s7 = inlined_call_operand.hbm [shape: bf16[128,128], index: 7, kind: input, shape index: {}]
  %s8 = inlined_call_operand.vmem [shape: f32[1,128], index: 8, kind: input, shape index: {}]
  %s9 = inlined_call_operand.hbm [shape: bf16[128,128], index: 9, kind: input, shape index: {}]
  %s10 = inlined_call_operand.vmem [shape: f32[1,128], index: 10, kind: input, shape index: {}]
  %s11 = inlined_call_operand.vmem [shape: f32[1,128], index: 11, kind: input, shape index: {}]
  %s12 = inlined_call_operand.vmem [shape: f32[1,128], index: 12, kind: input, shape index: {}]
  %s13 = inlined_call_operand.vmem [shape: f32[8,128], index: 13, kind: input, shape index: {}]
  %s14 = inlined_call_operand.hbm [shape: f32[8,128], index: 14, kind: output, shape index: {0}]
  %s15 = inlined_call_operand.hbm [shape: f32[8,128], index: 15, kind: output, shape index: {1}]
  %16 = xla_tuple %s14, %s15
  %s17 = sld [smem:[#allocation0]]
  $region98: #{tpu_custom_call.1} parent=0
    _
  %s19 = ssub.s32 1, %s17
  %s20 = scalar_select 0, %s19, %s17
  $region1: #{tpu_custom_call.1} parent=0
    #allocation3 [shape = 'u8[16384]{0}', space=vmem, size = 0x4000, scoped, tag = 'input window, operand 0, single buffered']
    #allocation4 [shape = 's32[1]{0}', space=sflag, size = 0x4, scoped, tag = 'scoped memory for tpu_custom_call.1']
    #allocation5 [shape = 's32[1]{0}', space=sflag, size = 0x4, scoped, tag = 'scoped memory for tpu_custom_call.1']
    #allocation6 [shape = 'u8[65536]{0}', space=vmem, size = 0x10000, scoped, tag = 'input window, operand 1, single buffered']
    #allocation7 [shape = 's32[1]{0}', space=sflag, size = 0x4, scoped, tag = 'scoped memory for tpu_custom_call.1']
    #allocation8 [shape = 'u8[65536]{0}', space=vmem, size = 0x10000, scoped, tag = 'input window, operand 3, single buffered']
    #allocation9 [shape = 'u8[131072]{0}', space=vmem, size = 0x20000, scoped, tag = 'input window, operand 5, single buffered']
    #allocation10 [shape = 's32[1]{0}', space=sflag, size = 0x4, scoped, tag = 'scoped memory for tpu_custom_call.1']
    #allocation11 [shape = 'u8[32768]{0}', space=vmem, size = 0x8000, scoped, tag = 'input window, operand 7, single buffered']
    #allocation12 [shape = 'u8[32768]{0}', space=vmem, size = 0x8000, scoped, tag = 'input window, operand 9, single buffered']
    #allocation13 [shape = 's32[1]{0}', space=sflag, size = 0x4, scoped, tag = 'scoped memory for tpu_custom_call.1']
    #allocation14 [shape = 'u8[4096]{0}', space=vmem, size = 0x1000, scoped, tag = 'output window, operand 0, single buffered']
    #allocation15 [shape = 'u8[4096]{0}', space=vmem, size = 0x1000, scoped, tag = 'output window, operand 1, single buffered']
    #allocation16 [shape = 's32[1]{0}', space=sflag, size = 0x4, scoped, tag = 'scoped memory for tpu_custom_call.1']
    %21 = vsyncpa [#allocation4], 0
    %22 = vsyncpa [#allocation7], 0
    %23 = vsyncpa [#allocation10], 0
    %24 = vsyncpa [#allocation13], 0
    %25 = vsyncpa [#allocation5], 0
    %26 = vsyncpa [#allocation16], 0
    // Predicated region
    $region2: #{tpu_custom_call.1} parent=1 // pred_check
      _
    $region3: #{tpu_custom_call.1} parent=1 // pred_check_branch
      %28 = sbr.rel (0) target = $region5
    $region4: #{tpu_custom_call.1} parent=1 // pred_region
      %s30 = ssub.s32 512, 512
      %31 = vsyncadd [#allocation4], %s30
      %s32 = sshll.u32 [#allocation3], 4
      %s33 = int_to_ptr.vmem [resolvable:$true] %s32
      %38 = dma.hbm_to_vmem [thread:$0]  %s0, 512, %s33, [#allocation4], 128, 128, 8
    $region5: #{tpu_custom_call.1} parent=1 // pred_fallthru
      _
    // Predicated region
    $region6: #{tpu_custom_call.1} parent=1 // pred_check
      _
    $region7: #{tpu_custom_call.1} parent=1 // pred_check_branch
      %40 = sbr.rel (0) target = $region9
    $region8: #{tpu_custom_call.1} parent=1 // pred_region
      %s42 = ssub.s32 2048, 2048
      %43 = vsyncadd [#allocation7], %s42
      %s44 = sshll.u32 [#allocation6], 4
      %s45 = int_to_ptr.vmem [resolvable:$true] %s44
      %50 = dma.hbm_to_vmem [thread:$0]  %s1, 2048, %s45, [#allocation7], 64, 64, 4
    $region9: #{tpu_custom_call.1} parent=1 // pred_fallthru
      _
    // Predicated region
    $region10: #{tpu_custom_call.1} parent=1 // pred_check
      _
    $region11: #{tpu_custom_call.1} parent=1 // pred_check_branch
      %52 = sbr.rel (0) target = $region13
    $region12: #{tpu_custom_call.1} parent=1 // pred_region
      _
    $region13: #{tpu_custom_call.1} parent=1 // pred_fallthru
      _
    // Predicated region
    $region14: #{tpu_custom_call.1} parent=1 // pred_check
      _
    $region15: #{tpu_custom_call.1} parent=1 // pred_check_branch
      %54 = sbr.rel (0) target = $region17
    $region16: #{tpu_custom_call.1} parent=1 // pred_region
      %s56 = ssub.s32 2048, 2048
      %57 = vsyncadd [#allocation7], %s56
      %s58 = sshll.u32 [#allocation8], 4
      %s59 = int_to_ptr.vmem [resolvable:$true] %s58
      %64 = dma.hbm_to_vmem [thread:$0]  %s3, 2048, %s59, [#allocation7], 64, 64, 4
    $region17: #{tpu_custom_call.1} parent=1 // pred_fallthru
      _
    // Predicated region
    $region18: #{tpu_custom_call.1} parent=1 // pred_check
      _
    $region19: #{tpu_custom_call.1} parent=1 // pred_check_branch
      %66 = sbr.rel (0) target = $region21
    $region20: #{tpu_custom_call.1} parent=1 // pred_region
      _
    $region21: #{tpu_custom_call.1} parent=1 // pred_fallthru
      _
    // Predicated region
    $region22: #{tpu_custom_call.1} parent=1 // pred_check
      _
    $region23: #{tpu_custom_call.1} parent=1 // pred_check_branch
      %68 = sbr.rel (0) target = $region25
    $region24: #{tpu_custom_call.1} parent=1 // pred_region
      %s70 = ssub.s32 4096, 4096
      %71 = vsyncadd [#allocation10], %s70
      %s72 = sshll.u32 [#allocation9], 4
      %s73 = int_to_ptr.vmem [resolvable:$true] %s72
      %78 = dma.hbm_to_vmem [thread:$0]  %s5, 4096, %s73, [#allocation10], 64, 64, 4
    $region25: #{tpu_custom_call.1} parent=1 // pred_fallthru
      _
    // Predicated region
    $region26: #{tpu_custom_call.1} parent=1 // pred_check
      _
    $region27: #{tpu_custom_call.1} parent=1 // pred_check_branch
      %80 = sbr.rel (0) target = $region29
    $region28: #{tpu_custom_call.1} parent=1 // pred_region
      _
    $region29: #{tpu_custom_call.1} parent=1 // pred_fallthru
      _
    // Predicated region
    $region30: #{tpu_custom_call.1} parent=1 // pred_check
      _
    $region31: #{tpu_custom_call.1} parent=1 // pred_check_branch
      %82 = sbr.rel (0) target = $region33
    $region32: #{tpu_custom_call.1} parent=1 // pred_region
      %s84 = ssub.s32 1024, 1024
      %85 = vsyncadd [#allocation10], %s84
      %s86 = sshll.u32 [#allocation11], 4
      %s87 = int_to_ptr.vmem [resolvable:$true] %s86
      %92 = dma.hbm_to_vmem [thread:$0]  %s7, 1024, %s87, [#allocation10], 64, 64, 4
    $region33: #{tpu_custom_call.1} parent=1 // pred_fallthru
      _
    // Predicated region
    $region34: #{tpu_custom_call.1} parent=1 // pred_check
      _
    $region35: #{tpu_custom_call.1} parent=1 // pred_check_branch
      %94 = sbr.rel (0) target = $region37
    $region36: #{tpu_custom_call.1} parent=1 // pred_region
      _
    $region37: #{tpu_custom_call.1} parent=1 // pred_fallthru
      _
    // Predicated region
    $region38: #{tpu_custom_call.1} parent=1 // pred_check
      _
    $region39: #{tpu_custom_call.1} parent=1 // pred_check_branch
      %96 = sbr.rel (0) target = $region41
    $region40: #{tpu_custom_call.1} parent=1 // pred_region
      %s98 = ssub.s32 1024, 1024
      %99 = vsyncadd [#allocation13], %s98
      %s100 = sshll.u32 [#allocation12], 4
      %s101 = int_to_ptr.vmem [resolvable:$true] %s100
      %106 = dma.hbm_to_vmem [thread:$0]  %s9, 1024, %s101, [#allocation13], 64, 64, 4
    $region41: #{tpu_custom_call.1} parent=1 // pred_fallthru
      _
    // Predicated region
    $region42: #{tpu_custom_call.1} parent=1 // pred_check
      _
    $region43: #{tpu_custom_call.1} parent=1 // pred_check_branch
      %108 = sbr.rel (0) target = $region45
    $region44: #{tpu_custom_call.1} parent=1 // pred_region
      _
    $region45: #{tpu_custom_call.1} parent=1 // pred_fallthru
      _
    // Predicated region
    $region46: #{tpu_custom_call.1} parent=1 // pred_check
      _
    $region47: #{tpu_custom_call.1} parent=1 // pred_check_branch
      %110 = sbr.rel (0) target = $region49
    $region48: #{tpu_custom_call.1} parent=1 // pred_region
      _
    $region49: #{tpu_custom_call.1} parent=1 // pred_fallthru
      _
    // Predicated region
    $region50: #{tpu_custom_call.1} parent=1 // pred_check
      _
    $region51: #{tpu_custom_call.1} parent=1 // pred_check_branch
      %112 = sbr.rel (0) target = $region53
    $region52: #{tpu_custom_call.1} parent=1 // pred_region
      _
    $region53: #{tpu_custom_call.1} parent=1 // pred_fallthru
      _
    // Predicated region
    $region54: #{tpu_custom_call.1} parent=1 // pred_check
      _
    $region55: #{tpu_custom_call.1} parent=1 // pred_check_branch
      %114 = sbr.rel (0) target = $region57
    $region56: #{tpu_custom_call.1} parent=1 // pred_region
      _
    $region57: #{tpu_custom_call.1} parent=1 // pred_fallthru
      _
    // Predicated region
    $region58: #{tpu_custom_call.1} parent=1 // pred_check
      _
    $region59: #{tpu_custom_call.1} parent=1 // pred_check_branch
      %116 = sbr.rel (0) target = $region61
    $region60: #{tpu_custom_call.1} parent=1 // pred_region
      %117 = dma.done [#allocation4], 512
    $region61: #{tpu_custom_call.1} parent=1 // pred_fallthru
      _
    // Predicated region
    $region62: #{tpu_custom_call.1} parent=1 // pred_check
      _
    $region63: #{tpu_custom_call.1} parent=1 // pred_check_branch
      %119 = sbr.rel (0) target = $region65
    $region64: #{tpu_custom_call.1} parent=1 // pred_region
      %120 = dma.done [#allocation7], 2048
    $region65: #{tpu_custom_call.1} parent=1 // pred_fallthru
      _
    // Predicated region
    $region66: #{tpu_custom_call.1} parent=1 // pred_check
      _
    $region67: #{tpu_custom_call.1} parent=1 // pred_check_branch
      %122 = sbr.rel (0) target = $region69
    $region68: #{tpu_custom_call.1} parent=1 // pred_region
      %123 = dma.done [#allocation7], 2048
    $region69: #{tpu_custom_call.1} parent=1 // pred_fallthru
      _
    // Predicated region
    $region70: #{tpu_custom_call.1} parent=1 // pred_check
      _
    $region71: #{tpu_custom_call.1} parent=1 // pred_check_branch
      %125 = sbr.rel (0) target = $region73
    $region72: #{tpu_custom_call.1} parent=1 // pred_region
      %126 = dma.done [#allocation10], 4096
    $region73: #{tpu_custom_call.1} parent=1 // pred_fallthru
      _
    // Predicated region
    $region74: #{tpu_custom_call.1} parent=1 // pred_check
      _
    $region75: #{tpu_custom_call.1} parent=1 // pred_check_branch
      %128 = sbr.rel (0) target = $region77
    $region76: #{tpu_custom_call.1} parent=1 // pred_region
      %129 = dma.done [#allocation10], 1024
    $region77: #{tpu_custom_call.1} parent=1 // pred_fallthru
      _
    // Predicated region
    $region78: #{tpu_custom_call.1} parent=1 // pred_check
      _
    $region79: #{tpu_custom_call.1} parent=1 // pred_check_branch
      %131 = sbr.rel (0) target = $region81
    $region80: #{tpu_custom_call.1} parent=1 // pred_region
      %132 = dma.done [#allocation13], 1024
    $region81: #{tpu_custom_call.1} parent=1 // pred_fallthru
      _
    %v134 = vld [vmem:[#allocation3] sm:$0xff]
    %v135 = vld [vmem:[#allocation3 + $0x8] sm:$0xff]
    %v136 = vld [vmem:[#allocation3 + $0x10] sm:$0xff]
    %v137 = vld [vmem:[#allocation3 + $0x18] sm:$0xff]
    %v138 = vld [vmem:[#allocation6] sm:$0xf]
    %v139 = vld [vmem:[#allocation6 + $0x4] sm:$0xf]
    %v140 = vld [vmem:[#allocation6 + $0x8] sm:$0xf]
    %v141 = vld [vmem:[#allocation6 + $0xc] sm:$0xf]
    %v142 = vld [vmem:[#allocation6 + $0x10] sm:$0xf]
    %v143 = vld [vmem:[#allocation6 + $0x14] sm:$0xf]
    %v144 = vld [vmem:[#allocation6 + $0x18] sm:$0xf]
    %v145 = vld [vmem:[#allocation6 + $0x1c] sm:$0xf]
    %v146 = vld [vmem:[#allocation6 + $0x20] sm:$0xf]
    %v147 = vld [vmem:[#allocation6 + $0x24] sm:$0xf]
    %v148 = vld [vmem:[#allocation6 + $0x28] sm:$0xf]
    %v149 = vld [vmem:[#allocation6 + $0x2c] sm:$0xf]
    %v150 = vld [vmem:[#allocation6 + $0x30] sm:$0xf]
    %v151 = vld [vmem:[#allocation6 + $0x34] sm:$0xf]
    %v152 = vld [vmem:[#allocation6 + $0x38] sm:$0xf]
    %v153 = vld [vmem:[#allocation6 + $0x3c] sm:$0xf]
    %v154 = vld [vmem:[#allocation6 + $0x40] sm:$0xf]
    %v155 = vld [vmem:[#allocation6 + $0x44] sm:$0xf]
    %v156 = vld [vmem:[#allocation6 + $0x48] sm:$0xf]
    %v157 = vld [vmem:[#allocation6 + $0x4c] sm:$0xf]
    %v158 = vld [vmem:[#allocation6 + $0x50] sm:$0xf]
    %v159 = vld [vmem:[#allocation6 + $0x54] sm:$0xf]
    %v160 = vld [vmem:[#allocation6 + $0x58] sm:$0xf]
    %v161 = vld [vmem:[#allocation6 + $0x5c] sm:$0xf]
    %v162 = vld [vmem:[#allocation6 + $0x60] sm:$0xf]
    %v163 = vld [vmem:[#allocation6 + $0x64] sm:$0xf]
    %v164 = vld [vmem:[#allocation6 + $0x68] sm:$0xf]
    %v165 = vld [vmem:[#allocation6 + $0x6c] sm:$0xf]
    %v166 = vld [vmem:[#allocation6 + $0x70] sm:$0xf]
    %v167 = vld [vmem:[#allocation6 + $0x74] sm:$0xf]
    %v168 = vld [vmem:[#allocation6 + $0x78] sm:$0xf]
    %v169 = vld [vmem:[#allocation6 + $0x7c] sm:$0xf]
    %v170 = vld [vmem:[%s2] sm:$0x1]
    %v171 = vrot.slane %v134, 7
    %v172 = vrot.slane %v135, 7
    %v173 = vrot.slane %v136, 7
    %v174 = vrot.slane %v137, 7
    %v175 = vlaneseq
    %v176 = vshrl.u32 %v175, 7
    %vm177 = vcmp.lt.s32.totalorder %v176, 1
    %v178 = vsel %vm177, %v173, %v174
    %v179 = vsel %vm177, %v172, %v173
    %v180 = vsel %vm177, %v171, %v172
    %v181 = vsel %vm177, %v174, %v171
    %v182 = vadd.f32 %v134, %v181
    %v183 = vadd.f32 %v135, %v180
    %v184 = vadd.f32 %v136, %v179
    %v185 = vadd.f32 %v137, %v178
    %v186 = vrot.slane %v134, 1
    %v187 = vrot.slane %v135, 1
    %v188 = vrot.slane %v136, 1
    %v189 = vrot.slane %v137, 1
    %vm190 = vcmp.lt.s32.totalorder %v176, 7
    %v191 = vsel %vm190, %v188, %v189
    %v192 = vsel %vm190, %v187, %v188
    %v193 = vsel %vm190, %v186, %v187
    %v194 = vsel %vm190, %v189, %v186
    %v195 = vadd.f32 %v182, %v193
    %v196 = vadd.f32 %v183, %v192
    %v197 = vadd.f32 %v184, %v191
    %v198 = vadd.f32 %v185, %v194
    %v199 = vmul.f32 %v195, 0.33333334
    %v200 = vmul.f32 %v196, 0.33333334
    %v201 = vmul.f32 %v197, 0.33333334
    %v202 = vmul.f32 %v198, 0.33333334
    %v203 = vpack.c.bf16 %v135, %v134
    %v204 = vpack.c.bf16 %v200, %v199
    %v205 = vpack.c.bf16 %v137, %v136
    %v206 = vpack.c.bf16 %v202, %v201
    %v208 = vlaneseq
    %v209 = vshrl.u32 %v208, 7
    %v210 = vsub.s32 0, %v209
    %v211 = vrot.slane %v170, %v210
    %v245 = vunpack.c.l.b16 %v138
    %v246 = vunpack.c.l.b16 %v139
    %v247 = vunpack.c.l.b16 %v140
    %v248 = vunpack.c.l.b16 %v141
    %v249 = vunpack.c.l.b16 %v142
    %v250 = vunpack.c.l.b16 %v143
    %v251 = vunpack.c.l.b16 %v144
    %v252 = vunpack.c.l.b16 %v145
    %v253 = vunpack.c.l.b16 %v146
    %v254 = vunpack.c.l.b16 %v147
    %v255 = vunpack.c.l.b16 %v148
    %v256 = vunpack.c.l.b16 %v149
    %v257 = vunpack.c.l.b16 %v150
    %v258 = vunpack.c.l.b16 %v151
    %v259 = vunpack.c.l.b16 %v152
    %v260 = vunpack.c.l.b16 %v153
    %v261 = vunpack.c.l.b16 %v154
    %v262 = vunpack.c.l.b16 %v155
    %v263 = vunpack.c.l.b16 %v156
    %v264 = vunpack.c.l.b16 %v157
    %v265 = vunpack.c.l.b16 %v158
    %v266 = vunpack.c.l.b16 %v159
    %v267 = vunpack.c.l.b16 %v160
    %v268 = vunpack.c.l.b16 %v161
    %v269 = vunpack.c.l.b16 %v162
    %v270 = vunpack.c.l.b16 %v163
    %v271 = vunpack.c.l.b16 %v164
    %v272 = vunpack.c.l.b16 %v165
    %v273 = vunpack.c.l.b16 %v166
    %v274 = vunpack.c.l.b16 %v167
    %v275 = vunpack.c.l.b16 %v168
    %v276 = vunpack.c.l.b16 %v169
    %v277 = vpack.c.b16 %v246, %v245
    %v278 = vpack.c.b16 %v248, %v247
    %v279 = vpack.c.b16 %v250, %v249
    %v280 = vpack.c.b16 %v252, %v251
    %v281 = vpack.c.b16 %v254, %v253
    %v282 = vpack.c.b16 %v256, %v255
    %v283 = vpack.c.b16 %v258, %v257
    %v284 = vpack.c.b16 %v260, %v259
    %v285 = vpack.c.b16 %v262, %v261
    %v286 = vpack.c.b16 %v264, %v263
    %v287 = vpack.c.b16 %v266, %v265
    %v288 = vpack.c.b16 %v268, %v267
    %v289 = vpack.c.b16 %v270, %v269
    %v290 = vpack.c.b16 %v272, %v271
    %v291 = vpack.c.b16 %v274, %v273
    %v292 = vpack.c.b16 %v276, %v275
    %309 = vmatprep.subr.bf16.mxu0 0
    %310 = vmatpush1.bf16.msra.mxu0 %v277
    %311 = vmatprep.subr.bf16.mxu0 0
    %312 = vmatpush1.bf16.msra.mxu0 %v278
    %313 = vmatprep.subr.bf16.mxu0 0
    %314 = vmatpush1.bf16.msra.mxu0 %v279
    %315 = vmatprep.subr.bf16.mxu0 0
    %316 = vmatpush1.bf16.msra.mxu0 %v280
    %317 = vmatprep.subr.bf16.mxu0 0
    %318 = vmatpush1.bf16.msra.mxu0 %v281
    %319 = vmatprep.subr.bf16.mxu0 0
    %320 = vmatpush1.bf16.msra.mxu0 %v282
    %321 = vmatprep.subr.bf16.mxu0 0
    %322 = vmatpush1.bf16.msra.mxu0 %v283
    %323 = vmatprep.subr.bf16.mxu0 0
    %324 = vmatpush1.bf16.msra.mxu0 %v284
    %325 = vmatprep.subr.bf16.mxu0 0
    %326 = vmatpush1.bf16.msra.mxu0 %v285
    %327 = vmatprep.subr.bf16.mxu0 0
    %328 = vmatpush1.bf16.msra.mxu0 %v286
    %329 = vmatprep.subr.bf16.mxu0 0
    %330 = vmatpush1.bf16.msra.mxu0 %v287
    %331 = vmatprep.subr.bf16.mxu0 0
    %332 = vmatpush1.bf16.msra.mxu0 %v288
    %333 = vmatprep.subr.bf16.mxu0 0
    %334 = vmatpush1.bf16.msra.mxu0 %v289
    %335 = vmatprep.subr.bf16.mxu0 0
    %336 = vmatpush1.bf16.msra.mxu0 %v290
    %337 = vmatprep.subr.bf16.mxu0 0
    %338 = vmatpush1.bf16.msra.mxu0 %v291
    %339 = vmatprep.subr.bf16.mxu0 0
    %340 = vmatpush1.bf16.msra.mxu0 %v292
    %341 = vmatprep.mubr.bf16.mxu0 %v204
    %342 = vmatmul.mubr.bf16.gmra.mrb[0].mxu0 %v203
    %v343 = vpop.f32.mrb[0].mxu0
    %v344 = vadd.f32 %v211, %v343
    %v345 = vpop.f32.mrb[0].mxu0
    %v346 = vpop.f32.mrb[0].mxu0
    %v347 = vadd.f32 %v211, %v346
    %v348 = vpop.f32.mrb[0].mxu0
    %349 = vmatprep.mubr.bf16.mxu0 %v206
    %350 = vmatmul.mubr.bf16.gmra.mrb[0].mxu0 %v205
    %v351 = vpop.f32.mrb[0].mxu0
    %v352 = vadd.f32 %v211, %v351
    %v353 = vpop.f32.mrb[0].mxu0
    %v354 = vpop.f32.mrb[0].mxu0
    %v355 = vadd.f32 %v211, %v354
    %v356 = vpop.f32.mrb[0].mxu0
    %357 = vdwg.mxu0
    %v358 = vmax.f32 %v344, 0.0
    %v359 = vmax.f32 %v347, 0.0
    %v360 = vmax.f32 %v352, 0.0
    %v361 = vmax.f32 %v355, 0.0
    %v362 = vld [vmem:[#allocation8] sm:$0xf]
    %v363 = vld [vmem:[#allocation8 + $0x4] sm:$0xf]
    %v364 = vld [vmem:[#allocation8 + $0x8] sm:$0xf]
    %v365 = vld [vmem:[#allocation8 + $0xc] sm:$0xf]
    %v366 = vld [vmem:[#allocation8 + $0x10] sm:$0xf]
    %v367 = vld [vmem:[#allocation8 + $0x14] sm:$0xf]
    %v368 = vld [vmem:[#allocation8 + $0x18] sm:$0xf]
    %v369 = vld [vmem:[#allocation8 + $0x1c] sm:$0xf]
    %v370 = vld [vmem:[#allocation8 + $0x20] sm:$0xf]
    %v371 = vld [vmem:[#allocation8 + $0x24] sm:$0xf]
    %v372 = vld [vmem:[#allocation8 + $0x28] sm:$0xf]
    %v373 = vld [vmem:[#allocation8 + $0x2c] sm:$0xf]
    %v374 = vld [vmem:[#allocation8 + $0x30] sm:$0xf]
    %v375 = vld [vmem:[#allocation8 + $0x34] sm:$0xf]
    %v376 = vld [vmem:[#allocation8 + $0x38] sm:$0xf]
    %v377 = vld [vmem:[#allocation8 + $0x3c] sm:$0xf]
    %v378 = vld [vmem:[#allocation8 + $0x40] sm:$0xf]
    %v379 = vld [vmem:[#allocation8 + $0x44] sm:$0xf]
    %v380 = vld [vmem:[#allocation8 + $0x48] sm:$0xf]
    %v381 = vld [vmem:[#allocation8 + $0x4c] sm:$0xf]
    %v382 = vld [vmem:[#allocation8 + $0x50] sm:$0xf]
    %v383 = vld [vmem:[#allocation8 + $0x54] sm:$0xf]
    %v384 = vld [vmem:[#allocation8 + $0x58] sm:$0xf]
    %v385 = vld [vmem:[#allocation8 + $0x5c] sm:$0xf]
    %v386 = vld [vmem:[#allocation8 + $0x60] sm:$0xf]
    %v387 = vld [vmem:[#allocation8 + $0x64] sm:$0xf]
    %v388 = vld [vmem:[#allocation8 + $0x68] sm:$0xf]
    %v389 = vld [vmem:[#allocation8 + $0x6c] sm:$0xf]
    %v390 = vld [vmem:[#allocation8 + $0x70] sm:$0xf]
    %v391 = vld [vmem:[#allocation8 + $0x74] sm:$0xf]
    %v392 = vld [vmem:[#allocation8 + $0x78] sm:$0xf]
    %v393 = vld [vmem:[#allocation8 + $0x7c] sm:$0xf]
    %v394 = vld [vmem:[%s4] sm:$0x1]
    %v395 = vrot.slane %v358, 7
    %v396 = vrot.slane %v359, 7
    %v397 = vrot.slane %v360, 7
    %v398 = vrot.slane %v361, 7
    %v399 = vsel %vm177, %v397, %v398
    %v400 = vsel %vm177, %v396, %v397
    %v401 = vsel %vm177, %v395, %v396
    %v402 = vsel %vm177, %v398, %v395
    %v403 = vadd.f32 %v358, %v402
    %v404 = vadd.f32 %v359, %v401
    %v405 = vadd.f32 %v360, %v400
    %v406 = vadd.f32 %v361, %v399
    %v407 = vrot.slane %v358, 1
    %v408 = vrot.slane %v359, 1
    %v409 = vrot.slane %v360, 1
    %v410 = vrot.slane %v361, 1
    %v411 = vsel %vm190, %v409, %v410
    %v412 = vsel %vm190, %v408, %v409
    %v413 = vsel %vm190, %v407, %v408
    %v414 = vsel %vm190, %v410, %v407
    %v415 = vadd.f32 %v403, %v413
    %v416 = vadd.f32 %v404, %v412
    %v417 = vadd.f32 %v405, %v411
    %v418 = vadd.f32 %v406, %v414
    %v419 = vmul.f32 %v415, 0.33333334
    %v420 = vmul.f32 %v416, 0.33333334
    %v421 = vmul.f32 %v417, 0.33333334
    %v422 = vmul.f32 %v418, 0.33333334
    %v423 = vpack.c.bf16 %v359, %v358
    %v424 = vpack.c.bf16 %v420, %v419
    %v425 = vpack.c.bf16 %v361, %v360
    %v426 = vpack.c.bf16 %v422, %v421
    %v428 = vlaneseq
    %v429 = vshrl.u32 %v428, 7
    %v430 = vsub.s32 0, %v429
    %v431 = vrot.slane %v394, %v430
    %v465 = vunpack.c.l.b16 %v362
    %v466 = vunpack.c.l.b16 %v363
    %v467 = vunpack.c.l.b16 %v364
    %v468 = vunpack.c.l.b16 %v365
    %v469 = vunpack.c.l.b16 %v366
    %v470 = vunpack.c.l.b16 %v367
    %v471 = vunpack.c.l.b16 %v368
    %v472 = vunpack.c.l.b16 %v369
    %v473 = vunpack.c.l.b16 %v370
    %v474 = vunpack.c.l.b16 %v371
    %v475 = vunpack.c.l.b16 %v372
    %v476 = vunpack.c.l.b16 %v373
    %v477 = vunpack.c.l.b16 %v374
    %v478 = vunpack.c.l.b16 %v375
    %v479 = vunpack.c.l.b16 %v376
    %v480 = vunpack.c.l.b16 %v377
    %v481 = vunpack.c.l.b16 %v378
    %v482 = vunpack.c.l.b16 %v379
    %v483 = vunpack.c.l.b16 %v380
    %v484 = vunpack.c.l.b16 %v381
    %v485 = vunpack.c.l.b16 %v382
    %v486 = vunpack.c.l.b16 %v383
    %v487 = vunpack.c.l.b16 %v384
    %v488 = vunpack.c.l.b16 %v385
    %v489 = vunpack.c.l.b16 %v386
    %v490 = vunpack.c.l.b16 %v387
    %v491 = vunpack.c.l.b16 %v388
    %v492 = vunpack.c.l.b16 %v389
    %v493 = vunpack.c.l.b16 %v390
    %v494 = vunpack.c.l.b16 %v391
    %v495 = vunpack.c.l.b16 %v392
    %v496 = vunpack.c.l.b16 %v393
    %v497 = vpack.c.b16 %v466, %v465
    %v498 = vpack.c.b16 %v468, %v467
    %v499 = vpack.c.b16 %v470, %v469
    %v500 = vpack.c.b16 %v472, %v471
    %v501 = vpack.c.b16 %v474, %v473
    %v502 = vpack.c.b16 %v476, %v475
    %v503 = vpack.c.b16 %v478, %v477
    %v504 = vpack.c.b16 %v480, %v479
    %v505 = vpack.c.b16 %v482, %v481
    %v506 = vpack.c.b16 %v484, %v483
    %v507 = vpack.c.b16 %v486, %v485
    %v508 = vpack.c.b16 %v488, %v487
    %v509 = vpack.c.b16 %v490, %v489
    %v510 = vpack.c.b16 %v492, %v491
    %v511 = vpack.c.b16 %v494, %v493
    %v512 = vpack.c.b16 %v496, %v495
    %529 = vmatprep.subr.bf16.mxu0 0
    %530 = vmatpush1.bf16.msra.mxu0 %v497
    %531 = vmatprep.subr.bf16.mxu0 0
    %532 = vmatpush1.bf16.msra.mxu0 %v498
    %533 = vmatprep.subr.bf16.mxu0 0
    %534 = vmatpush1.bf16.msra.mxu0 %v499
    %535 = vmatprep.subr.bf16.mxu0 0
    %536 = vmatpush1.bf16.msra.mxu0 %v500
    %537 = vmatprep.subr.bf16.mxu0 0
    %538 = vmatpush1.bf16.msra.mxu0 %v501
    %539 = vmatprep.subr.bf16.mxu0 0
    %540 = vmatpush1.bf16.msra.mxu0 %v502
    %541 = vmatprep.subr.bf16.mxu0 0
    %542 = vmatpush1.bf16.msra.mxu0 %v503
    %543 = vmatprep.subr.bf16.mxu0 0
    %544 = vmatpush1.bf16.msra.mxu0 %v504
    %545 = vmatprep.subr.bf16.mxu0 0
    %546 = vmatpush1.bf16.msra.mxu0 %v505
    %547 = vmatprep.subr.bf16.mxu0 0
    %548 = vmatpush1.bf16.msra.mxu0 %v506
    %549 = vmatprep.subr.bf16.mxu0 0
    %550 = vmatpush1.bf16.msra.mxu0 %v507
    %551 = vmatprep.subr.bf16.mxu0 0
    %552 = vmatpush1.bf16.msra.mxu0 %v508
    %553 = vmatprep.subr.bf16.mxu0 0
    %554 = vmatpush1.bf16.msra.mxu0 %v509
    %555 = vmatprep.subr.bf16.mxu0 0
    %556 = vmatpush1.bf16.msra.mxu0 %v510
    %557 = vmatprep.subr.bf16.mxu0 0
    %558 = vmatpush1.bf16.msra.mxu0 %v511
    %559 = vmatprep.subr.bf16.mxu0 0
    %560 = vmatpush1.bf16.msra.mxu0 %v512
    %561 = vmatprep.mubr.bf16.mxu0 %v424
    %562 = vmatmul.mubr.bf16.gmra.mrb[0].mxu0 %v423
    %v563 = vpop.f32.mrb[0].mxu0
    %v564 = vadd.f32 %v431, %v563
    %v565 = vpop.f32.mrb[0].mxu0
    %v566 = vpop.f32.mrb[0].mxu0
    %v567 = vadd.f32 %v431, %v566
    %v568 = vpop.f32.mrb[0].mxu0
    %569 = vmatprep.mubr.bf16.mxu0 %v426
    %570 = vmatmul.mubr.bf16.gmra.mrb[0].mxu0 %v425
    %v571 = vpop.f32.mrb[0].mxu0
    %v572 = vadd.f32 %v431, %v571
    %v573 = vpop.f32.mrb[0].mxu0
    %v574 = vpop.f32.mrb[0].mxu0
    %v575 = vadd.f32 %v431, %v574
    %v576 = vpop.f32.mrb[0].mxu0
    %577 = vdwg.mxu0
    %v578 = vmax.f32 %v564, 0.0
    %v579 = vmax.f32 %v567, 0.0
    %v580 = vmax.f32 %v572, 0.0
    %v581 = vmax.f32 %v575, 0.0
    %582 = vst [vmem:[#allocation2] sm:$0xff] %v578
    %583 = vst [vmem:[#allocation2 + $0x8] sm:$0xff] %v579
    %584 = vst [vmem:[#allocation2 + $0x10] sm:$0xff] %v580
    %585 = vst [vmem:[#allocation2 + $0x18] sm:$0xff] %v581
    %v586 = vld [vmem:[#allocation2] ss:$4 sm:$0xff]
    %s587 = scalar_lea.vmem [#allocation2], 1
    %v588 = vld [vmem:[%s587] ss:$4 sm:$0xff]
    %s589 = scalar_lea.vmem [#allocation2], 2
    %v590 = vld [vmem:[%s589] ss:$4 sm:$0xff]
    %s591 = scalar_lea.vmem [#allocation2], 3
    %v592 = vld [vmem:[%s591] ss:$4 sm:$0xff]
    %v593 = vpack.c.bf16 %v586, %v586
    %v594 = vpack.c.bf16 %v588, %v588
    %v595 = vpack.c.bf16 %v590, %v590
    %v596 = vpack.c.bf16 %v592, %v592
    %v597 = vld [vmem:[#allocation9] sm:$0xf]
    %v598 = vld [vmem:[#allocation9 + $0x4] sm:$0xf]
    %v599 = vld [vmem:[#allocation9 + $0x8] sm:$0xf]
    %v600 = vld [vmem:[#allocation9 + $0xc] sm:$0xf]
    %v601 = vld [vmem:[#allocation9 + $0x10] sm:$0xf]
    %v602 = vld [vmem:[#allocation9 + $0x14] sm:$0xf]
    %v603 = vld [vmem:[#allocation9 + $0x18] sm:$0xf]
    %v604 = vld [vmem:[#allocation9 + $0x1c] sm:$0xf]
    %v605 = vld [vmem:[#allocation9 + $0x20] sm:$0xf]
    %v606 = vld [vmem:[#allocation9 + $0x24] sm:$0xf]
    %v607 = vld [vmem:[#allocation9 + $0x28] sm:$0xf]
    %v608 = vld [vmem:[#allocation9 + $0x2c] sm:$0xf]
    %v609 = vld [vmem:[#allocation9 + $0x30] sm:$0xf]
    %v610 = vld [vmem:[#allocation9 + $0x34] sm:$0xf]
    %v611 = vld [vmem:[#allocation9 + $0x38] sm:$0xf]
    %v612 = vld [vmem:[#allocation9 + $0x3c] sm:$0xf]
    %v613 = vld [vmem:[#allocation9 + $0x40] sm:$0xf]
    %v614 = vld [vmem:[#allocation9 + $0x44] sm:$0xf]
    %v615 = vld [vmem:[#allocation9 + $0x48] sm:$0xf]
    %v616 = vld [vmem:[#allocation9 + $0x4c] sm:$0xf]
    %v617 = vld [vmem:[#allocation9 + $0x50] sm:$0xf]
    %v618 = vld [vmem:[#allocation9 + $0x54] sm:$0xf]
    %v619 = vld [vmem:[#allocation9 + $0x58] sm:$0xf]
    %v620 = vld [vmem:[#allocation9 + $0x5c] sm:$0xf]
    %v621 = vld [vmem:[#allocation9 + $0x60] sm:$0xf]
    %v622 = vld [vmem:[#allocation9 + $0x64] sm:$0xf]
    %v623 = vld [vmem:[#allocation9 + $0x68] sm:$0xf]
    %v624 = vld [vmem:[#allocation9 + $0x6c] sm:$0xf]
    %v625 = vld [vmem:[#allocation9 + $0x70] sm:$0xf]
    %v626 = vld [vmem:[#allocation9 + $0x74] sm:$0xf]
    %v627 = vld [vmem:[#allocation9 + $0x78] sm:$0xf]
    %v628 = vld [vmem:[#allocation9 + $0x7c] sm:$0xf]
    %v629 = vld [vmem:[#allocation9 + $0x80] sm:$0xf]
    %v630 = vld [vmem:[#allocation9 + $0x84] sm:$0xf]
    %v631 = vld [vmem:[#allocation9 + $0x88] sm:$0xf]
    %v632 = vld [vmem:[#allocation9 + $0x8c] sm:$0xf]
    %v633 = vld [vmem:[#allocation9 + $0x90] sm:$0xf]
    %v634 = vld [vmem:[#allocation9 + $0x94] sm:$0xf]
    %v635 = vld [vmem:[#allocation9 + $0x98] sm:$0xf]
    %v636 = vld [vmem:[#allocation9 + $0x9c] sm:$0xf]
    %v637 = vld [vmem:[#allocation9 + $0xa0] sm:$0xf]
    %v638 = vld [vmem:[#allocation9 + $0xa4] sm:$0xf]
    %v639 = vld [vmem:[#allocation9 + $0xa8] sm:$0xf]
    %v640 = vld [vmem:[#allocation9 + $0xac] sm:$0xf]
    %v641 = vld [vmem:[#allocation9 + $0xb0] sm:$0xf]
    %v642 = vld [vmem:[#allocation9 + $0xb4] sm:$0xf]
    %v643 = vld [vmem:[#allocation9 + $0xb8] sm:$0xf]
    %v644 = vld [vmem:[#allocation9 + $0xbc] sm:$0xf]
    %v645 = vld [vmem:[#allocation9 + $0xc0] sm:$0xf]
    %v646 = vld [vmem:[#allocation9 + $0xc4] sm:$0xf]
    %v647 = vld [vmem:[#allocation9 + $0xc8] sm:$0xf]
    %v648 = vld [vmem:[#allocation9 + $0xcc] sm:$0xf]
    %v649 = vld [vmem:[#allocation9 + $0xd0] sm:$0xf]
    %v650 = vld [vmem:[#allocation9 + $0xd4] sm:$0xf]
    %v651 = vld [vmem:[#allocation9 + $0xd8] sm:$0xf]
    %v652 = vld [vmem:[#allocation9 + $0xdc] sm:$0xf]
    %v653 = vld [vmem:[#allocation9 + $0xe0] sm:$0xf]
    %v654 = vld [vmem:[#allocation9 + $0xe4] sm:$0xf]
    %v655 = vld [vmem:[#allocation9 + $0xe8] sm:$0xf]
    %v656 = vld [vmem:[#allocation9 + $0xec] sm:$0xf]
    %v657 = vld [vmem:[#allocation9 + $0xf0] sm:$0xf]
    %v658 = vld [vmem:[#allocation9 + $0xf4] sm:$0xf]
    %v659 = vld [vmem:[#allocation9 + $0xf8] sm:$0xf]
    %v660 = vld [vmem:[#allocation9 + $0xfc] sm:$0xf]
    %v661 = vld [vmem:[%s6] sm:$0x1]
    %v663 = vlaneseq
    %v664 = vshrl.u32 %v663, 7
    %v665 = vsub.s32 0, %v664
    %v666 = vrot.slane %v661, %v665
    %v732 = vunpack.c.l.b16 %v597
    %v733 = vunpack.c.l.b16 %v598
    %v734 = vunpack.c.l.b16 %v599
    %v735 = vunpack.c.l.b16 %v600
    %v736 = vunpack.c.l.b16 %v601
    %v737 = vunpack.c.l.b16 %v602
    %v738 = vunpack.c.l.b16 %v603
    %v739 = vunpack.c.l.b16 %v604
    %v740 = vunpack.c.l.b16 %v605
    %v741 = vunpack.c.l.b16 %v606
    %v742 = vunpack.c.l.b16 %v607
    %v743 = vunpack.c.l.b16 %v608
    %v744 = vunpack.c.l.b16 %v609
    %v745 = vunpack.c.l.b16 %v610
    %v746 = vunpack.c.l.b16 %v611
    %v747 = vunpack.c.l.b16 %v612
    %v748 = vunpack.c.l.b16 %v613
    %v749 = vunpack.c.l.b16 %v614
    %v750 = vunpack.c.l.b16 %v615
    %v751 = vunpack.c.l.b16 %v616
    %v752 = vunpack.c.l.b16 %v617
    %v753 = vunpack.c.l.b16 %v618
    %v754 = vunpack.c.l.b16 %v619
    %v755 = vunpack.c.l.b16 %v620
    %v756 = vunpack.c.l.b16 %v621
    %v757 = vunpack.c.l.b16 %v622
    %v758 = vunpack.c.l.b16 %v623
    %v759 = vunpack.c.l.b16 %v624
    %v760 = vunpack.c.l.b16 %v625
    %v761 = vunpack.c.l.b16 %v626
    %v762 = vunpack.c.l.b16 %v627
    %v763 = vunpack.c.l.b16 %v628
    %v764 = vunpack.c.l.b16 %v629
    %v765 = vunpack.c.l.b16 %v630
    %v766 = vunpack.c.l.b16 %v631
    %v767 = vunpack.c.l.b16 %v632
    %v768 = vunpack.c.l.b16 %v633
    %v769 = vunpack.c.l.b16 %v634
    %v770 = vunpack.c.l.b16 %v635
    %v771 = vunpack.c.l.b16 %v636
    %v772 = vunpack.c.l.b16 %v637
    %v773 = vunpack.c.l.b16 %v638
    %v774 = vunpack.c.l.b16 %v639
    %v775 = vunpack.c.l.b16 %v640
    %v776 = vunpack.c.l.b16 %v641
    %v777 = vunpack.c.l.b16 %v642
    %v778 = vunpack.c.l.b16 %v643
    %v779 = vunpack.c.l.b16 %v644
    %v780 = vunpack.c.l.b16 %v645
    %v781 = vunpack.c.l.b16 %v646
    %v782 = vunpack.c.l.b16 %v647
    %v783 = vunpack.c.l.b16 %v648
    %v784 = vunpack.c.l.b16 %v649
    %v785 = vunpack.c.l.b16 %v650
    %v786 = vunpack.c.l.b16 %v651
    %v787 = vunpack.c.l.b16 %v652
    %v788 = vunpack.c.l.b16 %v653
    %v789 = vunpack.c.l.b16 %v654
    %v790 = vunpack.c.l.b16 %v655
    %v791 = vunpack.c.l.b16 %v656
    %v792 = vunpack.c.l.b16 %v657
    %v793 = vunpack.c.l.b16 %v658
    %v794 = vunpack.c.l.b16 %v659
    %v795 = vunpack.c.l.b16 %v660
    %v796 = vpack.c.b16 %v733, %v732
    %v797 = vpack.c.b16 %v735, %v734
    %v798 = vpack.c.b16 %v737, %v736
    %v799 = vpack.c.b16 %v739, %v738
    %v800 = vpack.c.b16 %v741, %v740
    %v801 = vpack.c.b16 %v743, %v742
    %v802 = vpack.c.b16 %v745, %v744
    %v803 = vpack.c.b16 %v747, %v746
    %v804 = vpack.c.b16 %v749, %v748
    %v805 = vpack.c.b16 %v751, %v750
    %v806 = vpack.c.b16 %v753, %v752
    %v807 = vpack.c.b16 %v755, %v754
    %v808 = vpack.c.b16 %v757, %v756
    %v809 = vpack.c.b16 %v759, %v758
    %v810 = vpack.c.b16 %v761, %v760
    %v811 = vpack.c.b16 %v763, %v762
    %v812 = vpack.c.b16 %v765, %v764
    %v813 = vpack.c.b16 %v767, %v766
    %v814 = vpack.c.b16 %v769, %v768
    %v815 = vpack.c.b16 %v771, %v770
    %v816 = vpack.c.b16 %v773, %v772
    %v817 = vpack.c.b16 %v775, %v774
    %v818 = vpack.c.b16 %v777, %v776
    %v819 = vpack.c.b16 %v779, %v778
    %v820 = vpack.c.b16 %v781, %v780
    %v821 = vpack.c.b16 %v783, %v782
    %v822 = vpack.c.b16 %v785, %v784
    %v823 = vpack.c.b16 %v787, %v786
    %v824 = vpack.c.b16 %v789, %v788
    %v825 = vpack.c.b16 %v791, %v790
    %v826 = vpack.c.b16 %v793, %v792
    %v827 = vpack.c.b16 %v795, %v794
    %860 = vmatprep.subr.bf16.mxu0 0
    %861 = vmatpush1.bf16.msra.mxu0 %v796
    %862 = vmatprep.subr.bf16.mxu0 0
    %863 = vmatpush1.bf16.msra.mxu0 %v797
    %864 = vmatprep.subr.bf16.mxu0 0
    %865 = vmatpush1.bf16.msra.mxu0 %v798
    %866 = vmatprep.subr.bf16.mxu0 0
    %867 = vmatpush1.bf16.msra.mxu0 %v799
    %868 = vmatprep.subr.bf16.mxu0 0
    %869 = vmatpush1.bf16.msra.mxu0 %v800
    %870 = vmatprep.subr.bf16.mxu0 0
    %871 = vmatpush1.bf16.msra.mxu0 %v801
    %872 = vmatprep.subr.bf16.mxu0 0
    %873 = vmatpush1.bf16.msra.mxu0 %v802
    %874 = vmatprep.subr.bf16.mxu0 0
    %875 = vmatpush1.bf16.msra.mxu0 %v803
    %876 = vmatprep.subr.bf16.mxu0 0
    %877 = vmatpush1.bf16.msra.mxu0 %v804
    %878 = vmatprep.subr.bf16.mxu0 0
    %879 = vmatpush1.bf16.msra.mxu0 %v805
    %880 = vmatprep.subr.bf16.mxu0 0
    %881 = vmatpush1.bf16.msra.mxu0 %v806
    %882 = vmatprep.subr.bf16.mxu0 0
    %883 = vmatpush1.bf16.msra.mxu0 %v807
    %884 = vmatprep.subr.bf16.mxu0 0
    %885 = vmatpush1.bf16.msra.mxu0 %v808
    %886 = vmatprep.subr.bf16.mxu0 0
    %887 = vmatpush1.bf16.msra.mxu0 %v809
    %888 = vmatprep.subr.bf16.mxu0 0
    %889 = vmatpush1.bf16.msra.mxu0 %v810
    %890 = vmatprep.subr.bf16.mxu0 0
    %891 = vmatpush1.bf16.msra.mxu0 %v811
    %892 = vmatprep.mubr.bf16.mxu0 %v594
    %893 = vmatmul.mubr.bf16.gmra.mrb[0].mxu0 %v593
    %v894 = vpop.f32.mrb[0].mxu0
    %v895 = vadd.f32 %v666, %v894
    %v896 = vpop.f32.mrb[0].mxu0
    %v897 = vpop.f32.mrb[0].mxu0
    %v898 = vpop.f32.mrb[0].mxu0
    %899 = vdwg.mxu0
    %900 = vmatprep.subr.bf16.mxu0 0
    %901 = vmatpush1.bf16.msra.mxu0 %v812
    %902 = vmatprep.subr.bf16.mxu0 0
    %903 = vmatpush1.bf16.msra.mxu0 %v813
    %904 = vmatprep.subr.bf16.mxu0 0
    %905 = vmatpush1.bf16.msra.mxu0 %v814
    %906 = vmatprep.subr.bf16.mxu0 0
    %907 = vmatpush1.bf16.msra.mxu0 %v815
    %908 = vmatprep.subr.bf16.mxu0 0
    %909 = vmatpush1.bf16.msra.mxu0 %v816
    %910 = vmatprep.subr.bf16.mxu0 0
    %911 = vmatpush1.bf16.msra.mxu0 %v817
    %912 = vmatprep.subr.bf16.mxu0 0
    %913 = vmatpush1.bf16.msra.mxu0 %v818
    %914 = vmatprep.subr.bf16.mxu0 0
    %915 = vmatpush1.bf16.msra.mxu0 %v819
    %916 = vmatprep.subr.bf16.mxu0 0
    %917 = vmatpush1.bf16.msra.mxu0 %v820
    %918 = vmatprep.subr.bf16.mxu0 0
    %919 = vmatpush1.bf16.msra.mxu0 %v821
    %920 = vmatprep.subr.bf16.mxu0 0
    %921 = vmatpush1.bf16.msra.mxu0 %v822
    %922 = vmatprep.subr.bf16.mxu0 0
    %923 = vmatpush1.bf16.msra.mxu0 %v823
    %924 = vmatprep.subr.bf16.mxu0 0
    %925 = vmatpush1.bf16.msra.mxu0 %v824
    %926 = vmatprep.subr.bf16.mxu0 0
    %927 = vmatpush1.bf16.msra.mxu0 %v825
    %928 = vmatprep.subr.bf16.mxu0 0
    %929 = vmatpush1.bf16.msra.mxu0 %v826
    %930 = vmatprep.subr.bf16.mxu0 0
    %931 = vmatpush1.bf16.msra.mxu0 %v827
    %932 = vmatprep.mubr.bf16.mxu0 %v596
    %933 = vmatmul.mubr.bf16.gmra.mrb[0].mxu0 %v595
    %v934 = vpop.f32.mrb[0].mxu0
    %v935 = vadd.f32 %v895, %v934
    %v936 = vpop.f32.mrb[0].mxu0
    %v937 = vpop.f32.mrb[0].mxu0
    %v938 = vpop.f32.mrb[0].mxu0
    %939 = vdwg.mxu0
    %v940 = vtanh.pop %v935
    %v941 = vpack.c.bf16 %v940, %v940
    %v942 = vld [vmem:[#allocation11] sm:$0xf]
    %v943 = vld [vmem:[#allocation11 + $0x4] sm:$0xf]
    %v944 = vld [vmem:[#allocation11 + $0x8] sm:$0xf]
    %v945 = vld [vmem:[#allocation11 + $0xc] sm:$0xf]
    %v946 = vld [vmem:[#allocation11 + $0x10] sm:$0xf]
    %v947 = vld [vmem:[#allocation11 + $0x14] sm:$0xf]
    %v948 = vld [vmem:[#allocation11 + $0x18] sm:$0xf]
    %v949 = vld [vmem:[#allocation11 + $0x1c] sm:$0xf]
    %v950 = vld [vmem:[#allocation11 + $0x20] sm:$0xf]
    %v951 = vld [vmem:[#allocation11 + $0x24] sm:$0xf]
    %v952 = vld [vmem:[#allocation11 + $0x28] sm:$0xf]
    %v953 = vld [vmem:[#allocation11 + $0x2c] sm:$0xf]
    %v954 = vld [vmem:[#allocation11 + $0x30] sm:$0xf]
    %v955 = vld [vmem:[#allocation11 + $0x34] sm:$0xf]
    %v956 = vld [vmem:[#allocation11 + $0x38] sm:$0xf]
    %v957 = vld [vmem:[#allocation11 + $0x3c] sm:$0xf]
    %v958 = vld [vmem:[%s8] sm:$0x1]
    %v960 = vlaneseq
    %v961 = vshrl.u32 %v960, 7
    %v962 = vsub.s32 0, %v961
    %v963 = vrot.slane %v958, %v962
    %v981 = vunpack.c.l.b16 %v942
    %v982 = vunpack.c.l.b16 %v943
    %v983 = vunpack.c.l.b16 %v944
    %v984 = vunpack.c.l.b16 %v945
    %v985 = vunpack.c.l.b16 %v946
    %v986 = vunpack.c.l.b16 %v947
    %v987 = vunpack.c.l.b16 %v948
    %v988 = vunpack.c.l.b16 %v949
    %v989 = vunpack.c.l.b16 %v950
    %v990 = vunpack.c.l.b16 %v951
    %v991 = vunpack.c.l.b16 %v952
    %v992 = vunpack.c.l.b16 %v953
    %v993 = vunpack.c.l.b16 %v954
    %v994 = vunpack.c.l.b16 %v955
    %v995 = vunpack.c.l.b16 %v956
    %v996 = vunpack.c.l.b16 %v957
    %v997 = vpack.c.b16 %v982, %v981
    %v998 = vpack.c.b16 %v984, %v983
    %v999 = vpack.c.b16 %v986, %v985
    %v1000 = vpack.c.b16 %v988, %v987
    %v1001 = vpack.c.b16 %v990, %v989
    %v1002 = vpack.c.b16 %v992, %v991
    %v1003 = vpack.c.b16 %v994, %v993
    %v1004 = vpack.c.b16 %v996, %v995
    %1013 = vmatprep.subr.bf16.mxu0 0
    %1014 = vmatpush1.bf16.msra.mxu0 %v997
    %1015 = vmatprep.subr.bf16.mxu0 0
    %1016 = vmatpush1.bf16.msra.mxu0 %v998
    %1017 = vmatprep.subr.bf16.mxu0 0
    %1018 = vmatpush1.bf16.msra.mxu0 %v999
    %1019 = vmatprep.subr.bf16.mxu0 0
    %1020 = vmatpush1.bf16.msra.mxu0 %v1000
    %1021 = vmatprep.subr.bf16.mxu0 0
    %1022 = vmatpush1.bf16.msra.mxu0 %v1001
    %1023 = vmatprep.subr.bf16.mxu0 0
    %1024 = vmatpush1.bf16.msra.mxu0 %v1002
    %1025 = vmatprep.subr.bf16.mxu0 0
    %1026 = vmatpush1.bf16.msra.mxu0 %v1003
    %1027 = vmatprep.subr.bf16.mxu0 0
    %1028 = vmatpush1.bf16.msra.mxu0 %v1004
    %1029 = vmatprep.subr.bf16.mxu0 0
    %1030 = vmatpush1.bf16.msra.mxu0 0
    %1031 = vmatprep.subr.bf16.mxu0 0
    %1032 = vmatpush1.bf16.msra.mxu0 0
    %1033 = vmatprep.subr.bf16.mxu0 0
    %1034 = vmatpush1.bf16.msra.mxu0 0
    %1035 = vmatprep.subr.bf16.mxu0 0
    %1036 = vmatpush1.bf16.msra.mxu0 0
    %1037 = vmatprep.subr.bf16.mxu0 0
    %1038 = vmatpush1.bf16.msra.mxu0 0
    %1039 = vmatprep.subr.bf16.mxu0 0
    %1040 = vmatpush1.bf16.msra.mxu0 0
    %1041 = vmatprep.subr.bf16.mxu0 0
    %1042 = vmatpush1.bf16.msra.mxu0 0
    %1043 = vmatprep.subr.bf16.mxu0 0
    %1044 = vmatpush1.bf16.msra.mxu0 0
    %1045 = vmatprep.mubr.bf16.mxu0 0
    %1046 = vmatmul.mubr.bf16.gmra.mrb[0].mxu0 %v941
    %v1047 = vpop.f32.mrb[0].mxu0
    %v1048 = vadd.f32 %v963, %v1047
    %v1049 = vpop.f32.mrb[0].mxu0
    %v1050 = vpop.f32.mrb[0].mxu0
    %v1051 = vpop.f32.mrb[0].mxu0
    %1052 = vdwg.mxu0
    %v1053 = vtanh.pop %v1048
    %v1054 = vpack.c.bf16 %v1053, %v1053
    %v1055 = vld [vmem:[#allocation12] sm:$0xf]
    %v1056 = vld [vmem:[#allocation12 + $0x4] sm:$0xf]
    %v1057 = vld [vmem:[#allocation12 + $0x8] sm:$0xf]
    %v1058 = vld [vmem:[#allocation12 + $0xc] sm:$0xf]
    %v1059 = vld [vmem:[#allocation12 + $0x10] sm:$0xf]
    %v1060 = vld [vmem:[#allocation12 + $0x14] sm:$0xf]
    %v1061 = vld [vmem:[#allocation12 + $0x18] sm:$0xf]
    %v1062 = vld [vmem:[#allocation12 + $0x1c] sm:$0xf]
    %v1063 = vld [vmem:[#allocation12 + $0x20] sm:$0xf]
    %v1064 = vld [vmem:[#allocation12 + $0x24] sm:$0xf]
    %v1065 = vld [vmem:[#allocation12 + $0x28] sm:$0xf]
    %v1066 = vld [vmem:[#allocation12 + $0x2c] sm:$0xf]
    %v1067 = vld [vmem:[#allocation12 + $0x30] sm:$0xf]
    %v1068 = vld [vmem:[#allocation12 + $0x34] sm:$0xf]
    %v1069 = vld [vmem:[#allocation12 + $0x38] sm:$0xf]
    %v1070 = vld [vmem:[#allocation12 + $0x3c] sm:$0xf]
    %v1071 = vld [vmem:[%s10] sm:$0x1]
    %v1073 = vlaneseq
    %v1074 = vshrl.u32 %v1073, 7
    %v1075 = vsub.s32 0, %v1074
    %v1076 = vrot.slane %v1071, %v1075
    %v1094 = vunpack.c.l.b16 %v1055
    %v1095 = vunpack.c.l.b16 %v1056
    %v1096 = vunpack.c.l.b16 %v1057
    %v1097 = vunpack.c.l.b16 %v1058
    %v1098 = vunpack.c.l.b16 %v1059
    %v1099 = vunpack.c.l.b16 %v1060
    %v1100 = vunpack.c.l.b16 %v1061
    %v1101 = vunpack.c.l.b16 %v1062
    %v1102 = vunpack.c.l.b16 %v1063
    %v1103 = vunpack.c.l.b16 %v1064
    %v1104 = vunpack.c.l.b16 %v1065
    %v1105 = vunpack.c.l.b16 %v1066
    %v1106 = vunpack.c.l.b16 %v1067
    %v1107 = vunpack.c.l.b16 %v1068
    %v1108 = vunpack.c.l.b16 %v1069
    %v1109 = vunpack.c.l.b16 %v1070
    %v1110 = vpack.c.b16 %v1095, %v1094
    %v1111 = vpack.c.b16 %v1097, %v1096
    %v1112 = vpack.c.b16 %v1099, %v1098
    %v1113 = vpack.c.b16 %v1101, %v1100
    %v1114 = vpack.c.b16 %v1103, %v1102
    %v1115 = vpack.c.b16 %v1105, %v1104
    %v1116 = vpack.c.b16 %v1107, %v1106
    %v1117 = vpack.c.b16 %v1109, %v1108
    %1126 = vmatprep.subr.bf16.mxu0 0
    %1127 = vmatpush1.bf16.msra.mxu0 %v1110
    %1128 = vmatprep.subr.bf16.mxu0 0
    %1129 = vmatpush1.bf16.msra.mxu0 %v1111
    %1130 = vmatprep.subr.bf16.mxu0 0
    %1131 = vmatpush1.bf16.msra.mxu0 %v1112
    %1132 = vmatprep.subr.bf16.mxu0 0
    %1133 = vmatpush1.bf16.msra.mxu0 %v1113
    %1134 = vmatprep.subr.bf16.mxu0 0
    %1135 = vmatpush1.bf16.msra.mxu0 %v1114
    %1136 = vmatprep.subr.bf16.mxu0 0
    %1137 = vmatpush1.bf16.msra.mxu0 %v1115
    %1138 = vmatprep.subr.bf16.mxu0 0
    %1139 = vmatpush1.bf16.msra.mxu0 %v1116
    %1140 = vmatprep.subr.bf16.mxu0 0
    %1141 = vmatpush1.bf16.msra.mxu0 %v1117
    %1142 = vmatprep.subr.bf16.mxu0 0
    %1143 = vmatpush1.bf16.msra.mxu0 0
    %1144 = vmatprep.subr.bf16.mxu0 0
    %1145 = vmatpush1.bf16.msra.mxu0 0
    %1146 = vmatprep.subr.bf16.mxu0 0
    %1147 = vmatpush1.bf16.msra.mxu0 0
    %1148 = vmatprep.subr.bf16.mxu0 0
    %1149 = vmatpush1.bf16.msra.mxu0 0
    %1150 = vmatprep.subr.bf16.mxu0 0
    %1151 = vmatpush1.bf16.msra.mxu0 0
    %1152 = vmatprep.subr.bf16.mxu0 0
    %1153 = vmatpush1.bf16.msra.mxu0 0
    %1154 = vmatprep.subr.bf16.mxu0 0
    %1155 = vmatpush1.bf16.msra.mxu0 0
    %1156 = vmatprep.subr.bf16.mxu0 0
    %1157 = vmatpush1.bf16.msra.mxu0 0
    %1158 = vmatprep.mubr.bf16.mxu0 0
    %1159 = vmatmul.mubr.bf16.gmra.mrb[0].mxu0 %v1054
    %v1160 = vpop.f32.mrb[0].mxu0
    %v1161 = vadd.f32 %v1076, %v1160
    %v1162 = vpop.f32.mrb[0].mxu0
    %v1163 = vpop.f32.mrb[0].mxu0
    %v1164 = vpop.f32.mrb[0].mxu0
    %1165 = vdwg.mxu0
    %1166 = vst [vmem:[#allocation14] sm:$0xff] %v1161
    %v1167 = vld [vmem:[%s13] sm:$0xff]
    %v1168 = vsub.f32 %v1167, %v1161
    %v1169 = vld [vmem:[%s12] sm:$0x1]
    %v1171 = vlaneseq
    %v1172 = vshrl.u32 %v1171, 7
    %v1173 = vsub.s32 0, %v1172
    %v1174 = vrot.slane %v1169, %v1173
    %v1176 = vmul.f32 %v1168, %v1174
    %v1177 = vmul.f32 %v1176, -0.5
    %v1178 = vmul.f32 %v1177, %v1176
    %v1179 = vld [vmem:[%s11] sm:$0x1]
    %v1181 = vlaneseq
    %v1182 = vshrl.u32 %v1181, 7
    %v1183 = vsub.s32 0, %v1182
    %v1184 = vrot.slane %v1179, %v1183
    %v1186 = vsub.f32 %v1178, %v1184
    %v1187 = vsub.f32 %v1186, 0.9189385
    %1188 = vst [vmem:[#allocation15] sm:$0xff] %v1187
    // Predicated region
    $region82: #{tpu_custom_call.1} parent=1 // pred_check
      _
    $region83: #{tpu_custom_call.1} parent=1 // pred_check_branch
      %1190 = sbr.rel (0) target = $region85
    $region84: #{tpu_custom_call.1} parent=1 // pred_region
      %s1192 = ssub.s32 128, 128
      %1193 = vsyncadd [#allocation5], %s1192
      %s1195 = sshll.u32 [#allocation14], 4
      %s1196 = int_to_ptr.vmem [resolvable:$true] %s1195
      %1198 = dma.vmem_to_hbm [thread:$0]  %s1196, 128, %s14, [#allocation5]
    $region85: #{tpu_custom_call.1} parent=1 // pred_fallthru
      _
    // Predicated region
    $region86: #{tpu_custom_call.1} parent=1 // pred_check
      _
    $region87: #{tpu_custom_call.1} parent=1 // pred_check_branch
      %1200 = sbr.rel (0) target = $region89
    $region88: #{tpu_custom_call.1} parent=1 // pred_region
      %s1202 = ssub.s32 128, 128
      %1203 = vsyncadd [#allocation16], %s1202
      %s1205 = sshll.u32 [#allocation15], 4
      %s1206 = int_to_ptr.vmem [resolvable:$true] %s1205
      %1208 = dma.vmem_to_hbm [thread:$0]  %s1206, 128, %s15, [#allocation16]
    $region89: #{tpu_custom_call.1} parent=1 // pred_fallthru
      _
    // Predicated region
    $region90: #{tpu_custom_call.1} parent=1 // pred_check
      _
    $region91: #{tpu_custom_call.1} parent=1 // pred_check_branch
      %1210 = sbr.rel (0) target = $region93
    $region92: #{tpu_custom_call.1} parent=1 // pred_region
      %1211 = dma.done [#allocation5], 128
    $region93: #{tpu_custom_call.1} parent=1 // pred_fallthru
      _
    // Predicated region
    $region94: #{tpu_custom_call.1} parent=1 // pred_check
      _
    $region95: #{tpu_custom_call.1} parent=1 // pred_check_branch
      %1213 = sbr.rel (0) target = $region97
    $region96: #{tpu_custom_call.1} parent=1 // pred_region
      %1214 = dma.done [#allocation16], 128
    $region97: #{tpu_custom_call.1} parent=1 // pred_fallthru
      _
    %1215 = vsyncpa [#allocation4], 1
    %1216 = vsyncpa [#allocation7], 1
    %1217 = vsyncpa [#allocation10], 1
    %1218 = vsyncpa [#allocation13], 1
    %1219 = vsyncpa [#allocation5], 1
    %1220 = vsyncpa [#allocation16], 1

</llo_original>
